<compile_context>
chip_gen: v7x
topology: tpu7x:2x2x1
jax: 0.10.0
libtpu: 0.0.40
codegen_flags: <defaults>
</compile_context>

<pallas_src>
import functools

import jax
import jax.numpy as jnp
import numpy as np
from jax.experimental import pallas as pl
from jax.experimental.pallas import tpu as pltpu

EDGE_DIM = 11


def _general_edge_conv_kernel(x_ref, adj_ref, s_ref, ea_ref, wx_ref, we_ref,
                              out_ref, *, aggr):
    f32 = jnp.float32
    bf16 = jnp.bfloat16

    # Sum of source-node features over incoming edges (MXU):   [T, F]
    agg_x = jnp.dot(adj_ref[...], x_ref[...], preferred_element_type=f32)
    # Sum of edge attributes over incoming edges (MXU):        [T, edge_dim]
    agg_e = jnp.dot(s_ref[...], ea_ref[...], preferred_element_type=f32)

    if aggr == "mean":
        # In-degree (duplicate edges counted).  EUP approx reciprocal keeps the
        # divide off the VALU.
        deg = jnp.sum(adj_ref[...].astype(f32), axis=-1, keepdims=True)
        inv = pl.reciprocal(jnp.maximum(deg, 1.0), approx=True)
        agg_x = agg_x * inv
        agg_e = agg_e * inv

    # The reference applies the message Linear per edge *before* summing, but the
    # Linear is linear and the aggregation is a sum, so projecting the aggregates
    # is mathematically identical: two small MXU matmuls per dst tile.
    out = jnp.dot(agg_x.astype(bf16), wx_ref[...], preferred_element_type=f32)
    out = out + jnp.dot(agg_e.astype(bf16), we_ref[...], preferred_element_type=f32)
    out_ref[...] = out


def general_edge_conv_pallas(x, adj, s_inc, ea, wx_t, we_t, *,
                             aggr="sum", tile_dst=128,
                             vmem_limit_bytes=40 * 1024 * 1024):
    """pallas_call wrapper.  All operands are expected in bf16 (f32 accumulate).

    VMEM per grid step (double-buffered blocks) =
        2 * tile_dst * (N + E_pad) * 2B  + resident x/ea/weights
    Choose tile_dst so this stays well under ~40 MiB (safe on v7x's 64 MiB per-TC
    VMEM; trivially satisfied at these demo shapes).
    """
    n_pad, feat = x.shape
    e_pad, edge_dim = ea.shape
    p_out = wx_t.shape[1]
    assert n_pad % tile_dst == 0, "node count must be padded to tile_dst"

    kernel = functools.partial(_general_edge_conv_kernel, aggr=aggr)

    return pl.pallas_call(
        kernel,
        out_shape=jax.ShapeDtypeStruct((n_pad, p_out), jnp.float32),
        grid_spec=pltpu.PrefetchScalarGridSpec(
            num_scalar_prefetch=0,
            grid=(n_pad // tile_dst,),
            in_specs=[
                pl.BlockSpec((n_pad, feat), lambda i: (0, 0)),       # x: VMEM-resident
                pl.BlockSpec((tile_dst, n_pad), lambda i: (i, 0)),   # adjacency dst tile
                pl.BlockSpec((tile_dst, e_pad), lambda i: (i, 0)),   # incidence dst tile
                pl.BlockSpec((e_pad, edge_dim), lambda i: (0, 0)),   # edge attrs: resident
                pl.BlockSpec((feat, p_out), lambda i: (0, 0)),       # Wx: resident
                pl.BlockSpec((edge_dim, p_out), lambda i: (0, 0)),   # We: resident
            ],
            out_specs=pl.BlockSpec((tile_dst, p_out), lambda i: (i, 0)),
        ),
        compiler_params=pltpu.CompilerParams(
            dimension_semantics=("parallel",),     # dst tiles split across TCs (v7x)
            vmem_limit_bytes=vmem_limit_bytes,
        ),
    )(x, adj, s_inc, ea, wx_t, we_t)


def general_edge_conv(x, edge_index, edge_attr, w_msg_t, *, aggr="sum", tile_dst=128):
    """Host glue: densify the edge list (layout plumbing only) and run the kernel.

    w_msg_t is the GraphGym message Linear weight, pre-transposed to
    [dim_in + edge_dim, dim_out] (torch Linear stores [dim_out, dim_in + edge_dim]).
    """
    if aggr not in ("sum", "add", "mean"):
        raise NotImplementedError(f"conv_aggr={aggr!r} not implemented")

    n, feat = x.shape
    e = edge_index.shape[1]
    edge_dim = edge_attr.shape[1]
    dim_out = w_msg_t.shape[1]
    assert w_msg_t.shape[0] == feat + edge_dim

    def _round_up(v, m):
        return ((v + m - 1) // m) * m

    n_pad = _round_up(n, tile_dst)
    e_pad = _round_up(e, 128)        # lane-dense incidence columns
    p_out = _round_up(dim_out, 128)  # lane-dense output stores (no masked vst tail)

    src = np.asarray(edge_index[0])
    dst = np.asarray(edge_index[1])

    adj = np.zeros((n_pad, n_pad), np.float32)          # [dst, src] edge counts
    np.add.at(adj, (dst, src), 1.0)                     # duplicates accumulate correctly
    s_inc = np.zeros((n_pad, e_pad), np.float32)        # [dst, edge] incidence
    s_inc[dst, np.arange(e)] = 1.0

    ea = np.zeros((e_pad, edge_dim), np.float32)
    ea[:e] = np.asarray(edge_attr)

    x_pad = np.zeros((n_pad, feat), np.float32)
    x_pad[:n] = np.asarray(x)

    w = np.zeros((feat + edge_dim, p_out), np.float32)  # zero-pad dim_out -> p_out
    w[:, :dim_out] = np.asarray(w_msg_t)
    wx_t, we_t = w[:feat], w[feat:]

    bf16 = jnp.bfloat16
    out = general_edge_conv_pallas(
        jnp.asarray(x_pad, dtype=bf16),
        jnp.asarray(adj, dtype=bf16),
        jnp.asarray(s_inc, dtype=bf16),
        jnp.asarray(ea, dtype=bf16),
        jnp.asarray(wx_t, dtype=bf16),
        jnp.asarray(we_t, dtype=bf16),
        aggr=aggr, tile_dst=tile_dst)
    return out[:n, :dim_out]


def reference_forward(x, edge_index, edge_attr, w_msg_t, *, aggr="sum"):
    """Pure-JAX edge-list reference mirroring GraphGym GeneralEdgeConvLayer
    (msg_direction='single', bias=False, normalize_adj=False)."""
    n = x.shape[0]
    src, dst = edge_index[0], edge_index[1]
    msg = jnp.concatenate([x[src], edge_attr], axis=-1) @ w_msg_t   # [E, dim_out]
    out = jax.ops.segment_sum(msg, dst, num_segments=n)             # sum aggregation
    if aggr == "mean":
        deg = jax.ops.segment_sum(jnp.ones(src.shape, jnp.float32), dst, num_segments=n)
        out = out / jnp.maximum(deg, 1.0)[:, None]
    return out


if __name__ == "__main__":
    N = 256          # nodes
    DIM_IN = 64
    DIM_OUT = 64
    TILE_DST = 128   # 2-step dst-tile grid, "parallel" across TensorCores

    key = jax.random.PRNGKey(0)
    k_x, k_ea, k_w = jax.random.split(key, 3)

    x = jax.random.normal(k_x, (N, DIM_IN), dtype=jnp.float32)

    # Deterministic edge list: ring (+1), skip (+3), plus 16 duplicated ring edges
    # (exercises the multigraph-correct count-adjacency densification).
    base = np.arange(N)
    src = np.concatenate([base, base, np.arange(16)])
    dst = np.concatenate([(base + 1) % N, (base + 3) % N, (np.arange(16) + 1) % N])
    edge_index = jnp.asarray(np.stack([src, dst]).astype(np.int32))   # [2, E]
    E = edge_index.shape[1]
    edge_attr = jax.random.normal(k_ea, (E, EDGE_DIM), dtype=jnp.float32)

    # GraphGym message Linear weight (bias=False), pre-transposed to [F+edge_dim, dim_out].
    w_msg_t = (jax.random.normal(k_w, (DIM_IN + EDGE_DIM, DIM_OUT), dtype=jnp.float32)
               / np.sqrt(DIM_IN + EDGE_DIM)).astype(jnp.float32)

    out = general_edge_conv(x, edge_index, edge_attr, w_msg_t,
                            aggr="sum", tile_dst=TILE_DST)
    out = jax.block_until_ready(out)

    ref = jax.block_until_ready(reference_forward(x, edge_index, edge_attr, w_msg_t))

    # bf16 MXU operands (per perf guidance) vs. f32 reference: per-operand
    # quantization is ~2^-9 relative, accumulated in f32 over a 75-term
    # contraction, so deviations stay well below 5e-2 at these magnitudes.
    np.testing.assert_allclose(np.asarray(out), np.asarray(ref), rtol=5e-2, atol=5e-2)
    print("KERNEL_OK")
</pallas_src>

<mosaic_0001>
module attributes {stable_mosaic.version = 11 : i64} {
  func.func @_general_edge_conv_kernel(%arg0: i32, %arg1: memref<256x64xbf16, #tpu.memory_space<vmem>>, %arg2: memref<128x256xbf16, #tpu.memory_space<vmem>>, %arg3: memref<128x640xbf16, #tpu.memory_space<vmem>>, %arg4: memref<640x11xbf16, #tpu.memory_space<vmem>>, %arg5: memref<64x128xbf16, #tpu.memory_space<vmem>>, %arg6: memref<11x128xbf16, #tpu.memory_space<vmem>>, %arg7: memref<128x128xf32, #tpu.memory_space<vmem>>) attributes {dimension_semantics = [#tpu.dimension_semantics<parallel>], iteration_bounds = array<i64: 2>, scalar_prefetch = 0 : i64, scratch_operands = 0 : i64, tpu.core_type = #tpu.core_type<tc>, window_params = [{pipeline_mode = #tpu.pipeline_mode<synchronous>, transform_indices = @transform_0, window_bounds = array<i64: 256, 64>}, {transform_indices = @transform_1, window_bounds = array<i64: 128, 256>}, {transform_indices = @transform_2, window_bounds = array<i64: 128, 640>}, {pipeline_mode = #tpu.pipeline_mode<synchronous>, transform_indices = @transform_3, window_bounds = array<i64: 640, 11>}, {pipeline_mode = #tpu.pipeline_mode<synchronous>, transform_indices = @transform_4, window_bounds = array<i64: 64, 128>}, {pipeline_mode = #tpu.pipeline_mode<synchronous>, transform_indices = @transform_5, window_bounds = array<i64: 11, 128>}, {transform_indices = @transform_6, window_bounds = array<i64: 128, 128>}]} {
    %c0 = arith.constant 0 : index
    %c0_0 = arith.constant 0 : index
    %0 = vector.load %arg2[%c0, %c0_0] : memref<128x256xbf16, #tpu.memory_space<vmem>>, vector<128x256xbf16>
    %c0_1 = arith.constant 0 : index
    %c0_2 = arith.constant 0 : index
    %1 = vector.load %arg1[%c0_1, %c0_2] : memref<256x64xbf16, #tpu.memory_space<vmem>>, vector<256x64xbf16>
    %cst = arith.constant dense<0.000000e+00> : vector<128x64xf32>
    %2 = tpu.matmul %0, %1, %cst {dimension_numbers = #tpu.dot_dimension_numbers<[1], [0], [0], [1], [0, 0, 1, 1], [], []>} : vector<128x256xbf16>, vector<256x64xbf16>, vector<128x64xf32> -> vector<128x64xf32>
    %c0_3 = arith.constant 0 : index
    %c0_4 = arith.constant 0 : index
    %3 = vector.load %arg3[%c0_3, %c0_4] : memref<128x640xbf16, #tpu.memory_space<vmem>>, vector<128x640xbf16>
    %c0_5 = arith.constant 0 : index
    %c0_6 = arith.constant 0 : index
    %4 = vector.load %arg4[%c0_5, %c0_6] : memref<640x11xbf16, #tpu.memory_space<vmem>>, vector<640x11xbf16>
    %cst_7 = arith.constant dense<0.000000e+00> : vector<128x11xf32>
    %5 = tpu.matmul %3, %4, %cst_7 {dimension_numbers = #tpu.dot_dimension_numbers<[1], [0], [0], [1], [0, 0, 1, 1], [], []>} : vector<128x640xbf16>, vector<640x11xbf16>, vector<128x11xf32> -> vector<128x11xf32>
    %6 = arith.truncf %2 : vector<128x64xf32> to vector<128x64xbf16>
    %c0_8 = arith.constant 0 : index
    %c0_9 = arith.constant 0 : index
    %7 = vector.load %arg5[%c0_8, %c0_9] : memref<64x128xbf16, #tpu.memory_space<vmem>>, vector<64x128xbf16>
    %cst_10 = arith.constant dense<0.000000e+00> : vector<128x128xf32>
    %8 = tpu.matmul %6, %7, %cst_10 {dimension_numbers = #tpu.dot_dimension_numbers<[1], [0], [0], [1], [0, 0, 1, 1], [], []>} : vector<128x64xbf16>, vector<64x128xbf16>, vector<128x128xf32> -> vector<128x128xf32>
    %9 = arith.truncf %5 : vector<128x11xf32> to vector<128x11xbf16>
    %c0_11 = arith.constant 0 : index
    %c0_12 = arith.constant 0 : index
    %10 = vector.load %arg6[%c0_11, %c0_12] : memref<11x128xbf16, #tpu.memory_space<vmem>>, vector<11x128xbf16>
    %cst_13 = arith.constant dense<0.000000e+00> : vector<128x128xf32>
    %11 = tpu.matmul %9, %10, %cst_13 {dimension_numbers = #tpu.dot_dimension_numbers<[1], [0], [0], [1], [0, 0, 1, 1], [], []>} : vector<128x11xbf16>, vector<11x128xbf16>, vector<128x128xf32> -> vector<128x128xf32>
    %12 = arith.addf %8, %11 : vector<128x128xf32>
    %c0_14 = arith.constant 0 : index
    %c0_15 = arith.constant 0 : index
    %13 = vector.load %arg7[%c0_14, %c0_15] : memref<128x128xf32, #tpu.memory_space<vmem>>, vector<128x128xf32>
    tpu.vector_store %arg7[%c0_14, %c0_15], %12 {strides = array<i32>} : memref<128x128xf32, #tpu.memory_space<vmem>>, vector<128x128xf32>,
    return
  }
  func.func @transform_0(%arg0: i32) -> (i32, i32) {
    %c0_i32 = arith.constant 0 : i32
    %c0_i32_0 = arith.constant 0 : i32
    %c0_i32_1 = arith.constant 0 : i32
    return %c0_i32, %c0_i32_0 : i32, i32
  }
  func.func @transform_1(%arg0: i32) -> (i32, i32) {
    %c0_i32 = arith.constant 0 : i32
    %c0_i32_0 = arith.constant 0 : i32
    return %arg0, %c0_i32 : i32, i32
  }
  func.func @transform_2(%arg0: i32) -> (i32, i32) {
    %c0_i32 = arith.constant 0 : i32
    %c0_i32_0 = arith.constant 0 : i32
    return %arg0, %c0_i32 : i32, i32
  }
  func.func @transform_3(%arg0: i32) -> (i32, i32) {
    %c0_i32 = arith.constant 0 : i32
    %c0_i32_0 = arith.constant 0 : i32
    %c0_i32_1 = arith.constant 0 : i32
    return %c0_i32, %c0_i32_0 : i32, i32
  }
  func.func @transform_4(%arg0: i32) -> (i32, i32) {
    %c0_i32 = arith.constant 0 : i32
    %c0_i32_0 = arith.constant 0 : i32
    %c0_i32_1 = arith.constant 0 : i32
    return %c0_i32, %c0_i32_0 : i32, i32
  }
  func.func @transform_5(%arg0: i32) -> (i32, i32) {
    %c0_i32 = arith.constant 0 : i32
    %c0_i32_0 = arith.constant 0 : i32
    %c0_i32_1 = arith.constant 0 : i32
    return %c0_i32, %c0_i32_0 : i32, i32
  }
  func.func @transform_6(%arg0: i32) -> (i32, i32) {
    %c0_i32 = arith.constant 0 : i32
    %c0_i32_0 = arith.constant 0 : i32
    return %arg0, %c0_i32 : i32, i32
  }
}

</mosaic_0001>

<llo_original>
// kernel: tpu_custom_call.1
$region0: #{tpu_custom_call.1}
  #allocation0 [shape = 'u32[]', space=smem, size = 0x4, offset = 0x4, fixed_abs, tag = 'smem constant byte address 0x4 - core index']
  #allocation1 [shape = 'u32[144,128]{1,0:T(1,128)}', space=vmem, size = 0x12000, scoped, tag = 'internal scratch']
  %s0 = inlined_call_operand.vmem [shape: bf16[256,64], index: 0, kind: input, shape index: {}]
  %s1 = inlined_call_operand.vmem [shape: bf16[256,256], index: 1, kind: input, shape index: {}]
  %s2 = inlined_call_operand.hbm [shape: bf16[256,640], index: 2, kind: input, shape index: {}]
  %s3 = inlined_call_operand.vmem [shape: bf16[640,11], index: 3, kind: input, shape index: {}]
  %s4 = inlined_call_operand.vmem [shape: bf16[64,128], index: 4, kind: input, shape index: {}]
  %s5 = inlined_call_operand.vmem [shape: bf16[11,128], index: 5, kind: input, shape index: {}]
  %s6 = inlined_call_operand.hbm [shape: f32[256,128], index: 6, kind: output, shape index: {}]
  %s7 = sld [smem:[#allocation0]]
  $region61: #{tpu_custom_call.1} parent=0
    _
  %s9 = ssub.s32 1, %s7
  %s10 = scalar_select 0, %s9, %s7
  $region1: #{tpu_custom_call.1} parent=0
    #allocation2 [shape = 'u8[327680]{0}', space=vmem, size = 0x50000, scoped, tag = 'input window, operand 2']
    #allocation3 [shape = 's32[2]{0}', space=sflag, size = 0x8, scoped, tag = 'scoped memory for tpu_custom_call.1']
    #allocation4 [shape = 's32[2]{0}', space=sflag, size = 0x8, scoped, tag = 'scoped memory for tpu_custom_call.1']
    #allocation5 [shape = 'u8[131072]{0}', space=vmem, size = 0x20000, scoped, tag = 'output window, operand 0']
    %11 = vsyncpa [#allocation3], 0
    %s12 = scalar_lea.sflag [#allocation3], 1
    %13 = vsyncpa %s12, 0
    %14 = vsyncpa [#allocation4], 0
    %s15 = scalar_lea.sflag [#allocation4], 1
    %16 = vsyncpa %s15, 0
    loop: start=0, step=1, limit=4
    $region2: #{tpu_custom_call.1} parent=1 // loop_pre_header
      _
    $region3: #{tpu_custom_call.1} parent=1 // loop_header
      %s18 = sphi 0, %s22
      %p19 = scmp.ge.s32.totalorder %s18, 4
      %s26 = sphi 0, %s26
      %s28 = sphi 0, %s26
      %s29 = sphi 0, %s28
      %s43 = sphi 0, %s29
      %s49 = sphi 0, %s51
      %s52 = sphi 0, %s49
      %s53 = sphi 0, %s52
      %s69 = sphi 0, %s53
      %s75 = sphi 0, %s77
      %s78 = sphi 0, %s75
      %s79 = sphi 0, %s78
      %s95 = sphi 0, %s79
      %s99 = sphi 0, %s99
      %s101 = sphi 0, %s99
      %s102 = sphi 0, %s101
      %s116 = sphi 0, %s102
      %s120 = sphi 0, %s120
      %s122 = sphi 0, %s120
      %s123 = sphi 0, %s122
      %s137 = sphi 0, %s123
      %s141 = sphi 0, %s141
      %s143 = sphi 0, %s141
      %s144 = sphi 0, %s143
      %s158 = sphi 0, %s144
      %s164 = sphi 0, %s166
      %s167 = sphi 0, %s164
      %s168 = sphi 0, %s167
      %s184 = sphi 0, %s168
    $region4: #{tpu_custom_call.1} parent=1 // loop_header_branch
      %21 = sbr.rel (%p19) target = $region8
    $region5: #{tpu_custom_call.1} parent=1 // loop_body
      %s23 = ssub.s32 %s18, 1
      %s24 = ssub.s32 %s18, 2
      %s25 = sadd.s32 %s18, 1
      %s27 = sadd.s32 %s26, 1
      %p30 = scmp.eq.s32.totalorder %s18, 1
      %p31 = scmp.ne.s32.totalorder %s26, %s28
      %p32 = scmp.eq.s32.totalorder %s18, 0
      %p33 = por %p31, %p32
      %p34 = scmp.ne.s32.totalorder %s26, %s28
      %p35 = scmp.eq.s32.totalorder %s23, 1
      %p36 = por %p34, %p35
      %p37 = scmp.ne.s32.totalorder %s28, %s29
      %p38 = scmp.eq.s32.totalorder %s23, 0
      %p39 = por %p37, %p38
      %p40 = scmp.ne.s32.totalorder %s28, %s29
      %p41 = scmp.eq.s32.totalorder %s24, 1
      %p42 = por %p40, %p41
      %p44 = scmp.ne.s32.totalorder %s29, %s43
      %p45 = scmp.eq.s32.totalorder %s24, 0
      %p46 = por %p44, %p45
      %s47 = ssub.s32 %s18, %s25
      %p48 = scmp.eq.s32.totalorder %s47, 0
      %s50 = sadd.s32 %s49, 1
      %s51 = scalar_select %p48, %s49, %s50
      %p54 = pneg %p48
      %p55 = scmp.eq.s32.totalorder %s18, 1
      %p56 = por %p54, %p55
      %p57 = scmp.ne.s32.totalorder %s49, %s52
      %p58 = scmp.eq.s32.totalorder %s18, 0
      %p59 = por %p57, %p58
      %p60 = scmp.ne.s32.totalorder %s49, %s52
      %p61 = scmp.eq.s32.totalorder %s23, 1
      %p62 = por %p60, %p61
      %p63 = scmp.ne.s32.totalorder %s52, %s53
      %p64 = scmp.eq.s32.totalorder %s23, 0
      %p65 = por %p63, %p64
      %p66 = scmp.ne.s32.totalorder %s52, %s53
      %p67 = scmp.eq.s32.totalorder %s24, 1
      %p68 = por %p66, %p67
      %p70 = scmp.ne.s32.totalorder %s53, %s69
      %p71 = scmp.eq.s32.totalorder %s24, 0
      %p72 = por %p70, %p71
      %s73 = ssub.s32 %s18, %s25
      %p74 = scmp.eq.s32.totalorder %s73, 0
      %s76 = sadd.s32 %s75, 1
      %s77 = scalar_select %p74, %s75, %s76
      %p80 = pneg %p74
      %p81 = scmp.eq.s32.totalorder %s18, 1
      %p82 = por %p80, %p81
      %p83 = scmp.ne.s32.totalorder %s75, %s78
      %p84 = scmp.eq.s32.totalorder %s18, 0
      %p85 = por %p83, %p84
      %p86 = scmp.ne.s32.totalorder %s75, %s78
      %p87 = scmp.eq.s32.totalorder %s23, 1
      %p88 = por %p86, %p87
      %p89 = scmp.ne.s32.totalorder %s78, %s79
      %p90 = scmp.eq.s32.totalorder %s23, 0
      %p91 = por %p89, %p90
      %p92 = scmp.ne.s32.totalorder %s78, %s79
      %p93 = scmp.eq.s32.totalorder %s24, 1
      %p94 = por %p92, %p93
      %p96 = scmp.ne.s32.totalorder %s79, %s95
      %p97 = scmp.eq.s32.totalorder %s24, 0
      %p98 = por %p96, %p97
      %s100 = sadd.s32 %s99, 1
      %p103 = scmp.eq.s32.totalorder %s18, 1
      %p104 = scmp.ne.s32.totalorder %s99, %s101
      %p105 = scmp.eq.s32.totalorder %s18, 0
      %p106 = por %p104, %p105
      %p107 = scmp.ne.s32.totalorder %s99, %s101
      %p108 = scmp.eq.s32.totalorder %s23, 1
      %p109 = por %p107, %p108
      %p110 = scmp.ne.s32.totalorder %s101, %s102
      %p111 = scmp.eq.s32.totalorder %s23, 0
      %p112 = por %p110, %p111
      %p113 = scmp.ne.s32.totalorder %s101, %s102
      %p114 = scmp.eq.s32.totalorder %s24, 1
      %p115 = por %p113, %p114
      %p117 = scmp.ne.s32.totalorder %s102, %s116
      %p118 = scmp.eq.s32.totalorder %s24, 0
      %p119 = por %p117, %p118
      %s121 = sadd.s32 %s120, 1
      %p124 = scmp.eq.s32.totalorder %s18, 1
      %p125 = scmp.ne.s32.totalorder %s120, %s122
      %p126 = scmp.eq.s32.totalorder %s18, 0
      %p127 = por %p125, %p126
      %p128 = scmp.ne.s32.totalorder %s120, %s122
      %p129 = scmp.eq.s32.totalorder %s23, 1
      %p130 = por %p128, %p129
      %p131 = scmp.ne.s32.totalorder %s122, %s123
      %p132 = scmp.eq.s32.totalorder %s23, 0
      %p133 = por %p131, %p132
      %p134 = scmp.ne.s32.totalorder %s122, %s123
      %p135 = scmp.eq.s32.totalorder %s24, 1
      %p136 = por %p134, %p135
      %p138 = scmp.ne.s32.totalorder %s123, %s137
      %p139 = scmp.eq.s32.totalorder %s24, 0
      %p140 = por %p138, %p139
      %s142 = sadd.s32 %s141, 1
      %p145 = scmp.eq.s32.totalorder %s18, 1
      %p146 = scmp.ne.s32.totalorder %s141, %s143
      %p147 = scmp.eq.s32.totalorder %s18, 0
      %p148 = por %p146, %p147
      %p149 = scmp.ne.s32.totalorder %s141, %s143
      %p150 = scmp.eq.s32.totalorder %s23, 1
      %p151 = por %p149, %p150
      %p152 = scmp.ne.s32.totalorder %s143, %s144
      %p153 = scmp.eq.s32.totalorder %s23, 0
      %p154 = por %p152, %p153
      %p155 = scmp.ne.s32.totalorder %s143, %s144
      %p156 = scmp.eq.s32.totalorder %s24, 1
      %p157 = por %p155, %p156
      %p159 = scmp.ne.s32.totalorder %s144, %s158
      %p160 = scmp.eq.s32.totalorder %s24, 0
      %p161 = por %p159, %p160
      %s162 = ssub.s32 %s18, %s25
      %p163 = scmp.eq.s32.totalorder %s162, 0
      %s165 = sadd.s32 %s164, 1
      %s166 = scalar_select %p163, %s164, %s165
      %p169 = pneg %p163
      %p170 = scmp.eq.s32.totalorder %s18, 1
      %p171 = por %p169, %p170
      %p172 = scmp.ne.s32.totalorder %s164, %s167
      %p173 = scmp.eq.s32.totalorder %s18, 0
      %p174 = por %p172, %p173
      %p175 = scmp.ne.s32.totalorder %s164, %s167
      %p176 = scmp.eq.s32.totalorder %s23, 1
      %p177 = por %p175, %p176
      %p178 = scmp.ne.s32.totalorder %s167, %s168
      %p179 = scmp.eq.s32.totalorder %s23, 0
      %p180 = por %p178, %p179
      %p181 = scmp.ne.s32.totalorder %s167, %s168
      %p182 = scmp.eq.s32.totalorder %s24, 1
      %p183 = por %p181, %p182
      %p185 = scmp.ne.s32.totalorder %s168, %s184
      %p186 = scmp.eq.s32.totalorder %s24, 0
      %p187 = por %p185, %p186
      %p188 = scmp.le.s32.totalorder 1, %s18
      %p189 = scmp.lt.s32.totalorder %s18, 3
      %p190 = pnand %p188, %p189
      %p191 = pneg %p190
      // Predicated region
      $region9: #{tpu_custom_call.1} parent=5 // pred_check
        _
      $region10: #{tpu_custom_call.1} parent=5 // pred_check_branch
        %193 = sbr.rel (%p190) target = $region12
      $region11: #{tpu_custom_call.1} parent=5 // pred_region
        %s194 = ssub.s32 %s18, 1
        // Predicated region
        $region13: #{tpu_custom_call.1} parent=11 // pred_check
          %p195 = pneg %p39
        $region14: #{tpu_custom_call.1} parent=11 // pred_check_branch
          %197 = sbr.rel (%p195) target = $region16
        $region15: #{tpu_custom_call.1} parent=11 // pred_region
          _
        $region16: #{tpu_custom_call.1} parent=11 // pred_fallthru
          _
        // Predicated region
        $region17: #{tpu_custom_call.1} parent=11 // pred_check
          %p198 = pneg %p112
        $region18: #{tpu_custom_call.1} parent=11 // pred_check_branch
          %200 = sbr.rel (%p198) target = $region20
        $region19: #{tpu_custom_call.1} parent=11 // pred_region
          _
        $region20: #{tpu_custom_call.1} parent=11 // pred_fallthru
          _
        // Predicated region
        $region21: #{tpu_custom_call.1} parent=11 // pred_check
          %p201 = pneg %p133
        $region22: #{tpu_custom_call.1} parent=11 // pred_check_branch
          %203 = sbr.rel (%p201) target = $region24
        $region23: #{tpu_custom_call.1} parent=11 // pred_region
          _
        $region24: #{tpu_custom_call.1} parent=11 // pred_fallthru
          _
        // Predicated region
        $region25: #{tpu_custom_call.1} parent=11 // pred_check
          %p204 = pneg %p154
        $region26: #{tpu_custom_call.1} parent=11 // pred_check_branch
          %206 = sbr.rel (%p204) target = $region28
        $region27: #{tpu_custom_call.1} parent=11 // pred_region
          _
        $region28: #{tpu_custom_call.1} parent=11 // pred_fallthru
          _
      $region12: #{tpu_custom_call.1} parent=5 // pred_fallthru
        _
      %p207 = scmp.lt.s32.totalorder %s18, 2
      // Predicated region
      $region29: #{tpu_custom_call.1} parent=5 // pred_check
        %p208 = pneg %p207
      $region30: #{tpu_custom_call.1} parent=5 // pred_check_branch
        %210 = sbr.rel (%p208) target = $region32
      $region31: #{tpu_custom_call.1} parent=5 // pred_region
        // Predicated region
        $region33: #{tpu_custom_call.1} parent=31 // pred_check
          %p211 = pneg %p59
        $region34: #{tpu_custom_call.1} parent=31 // pred_check_branch
          %213 = sbr.rel (%p211) target = $region36
        $region35: #{tpu_custom_call.1} parent=31 // pred_region
          %s214 = smul.u32 16, %s18
          %p215 = scmp.lt.s32.totalorder %s214, 31
          %s216 = scalar_select %p215, %s214, 31
          %s217 = smul.addr %s216, 2
          %s218 = smul.addr %s217, 4
          %s219 = scalar_lea.vmem %s1, %s218
          %s220 = smul.u32 16, %s18
        $region36: #{tpu_custom_call.1} parent=31 // pred_fallthru
          _
        // Predicated region
        $region37: #{tpu_custom_call.1} parent=31 // pred_check
          %p221 = pneg %p85
        $region38: #{tpu_custom_call.1} parent=31 // pred_check_branch
          %223 = sbr.rel (%p221) target = $region40
        $region39: #{tpu_custom_call.1} parent=31 // pred_region
          %s224 = sand.u32 %s75, 1
          %s225 = scalar_lea.sflag [#allocation3], %s224
          %s226 = sand.u32 %s75, 1
          %s227 = smul.addr %s226, 320
          %s228 = scalar_lea.vmem [#allocation2], %s227
          %s229 = smul.u32 16, %s18
          %s231 = ssub.s32 5120, 5120
          %232 = vsyncadd %s225, %s231
          %s233 = smul.addr %s229, 5
          %s234 = smul.addr %s233, 64
          %s235 = scalar_lea.hbm %s2, %s234
          %s236 = sshll.u32 %s228, 4
          %s237 = int_to_ptr.vmem [resolvable:$true] %s236
          %242 = dma.hbm_to_vmem [thread:$0]  %s235, 5120, %s237, %s225, 320, 320, 20
        $region40: #{tpu_custom_call.1} parent=31 // pred_fallthru
          _
      $region32: #{tpu_custom_call.1} parent=5 // pred_fallthru
        _
      %p243 = scmp.le.s32.totalorder 1, %s18
      %p244 = scmp.lt.s32.totalorder %s18, 3
      %p245 = pnand %p243, %p244
      %p246 = pneg %p245
      // Predicated region
      $region41: #{tpu_custom_call.1} parent=5 // pred_check
        _
      $region42: #{tpu_custom_call.1} parent=5 // pred_check_branch
        %248 = sbr.rel (%p245) target = $region44
      $region43: #{tpu_custom_call.1} parent=5 // pred_region
        %s249 = ssub.s32 %s18, 1
        %s250 = sand.u32 %s78, 1
        %s251 = scalar_lea.sflag [#allocation3], %s250
        %s252 = sand.u32 %s78, 1
        %s253 = smul.addr %s252, 320
        %s254 = scalar_lea.vmem [#allocation2], %s253
        // Predicated region
        $region45: #{tpu_custom_call.1} parent=43 // pred_check
          %p255 = pneg %p91
        $region46: #{tpu_custom_call.1} parent=43 // pred_check_branch
          %257 = sbr.rel (%p255) target = $region48
        $region47: #{tpu_custom_call.1} parent=43 // pred_region
          %258 = dma.done %s251, 5120
        $region48: #{tpu_custom_call.1} parent=43 // pred_fallthru
          _
        %p259 = pneg %p39
        %p260 = pneg %p36
        %s261 = smul.u32 16, %s23
        %p262 = scmp.lt.s32.totalorder %s261, 31
        %s263 = scalar_select %p262, %s261, 31
        %s264 = smul.addr %s263, 2
        %s265 = smul.addr %s264, 4
        %s266 = scalar_lea.vmem %s1, %s265
        %p267 = pneg %p65
        %p268 = pneg %p62
        %s269 = sand.u32 %s78, 1
        %s270 = scalar_lea.sflag [#allocation3], %s269
        %s271 = sand.u32 %s78, 1
        %s272 = smul.addr %s271, 320
        %s273 = scalar_lea.vmem [#allocation2], %s272
        %p274 = pneg %p91
        %p275 = pneg %p88
        %p276 = pneg %p112
        %p277 = pneg %p109
        %p278 = pneg %p133
        %p279 = pneg %p130
        %p280 = pneg %p154
        %p281 = pneg %p151
        %p282 = pneg %p180
        %p283 = pneg %p177
        %s284 = sand.u32 %s167, 1
        %s285 = scalar_lea.sflag [#allocation4], %s284
        %s286 = sand.u32 %s167, 1
        %s287 = smul.addr %s286, 128
        %s288 = scalar_lea.vmem [#allocation5], %s287
        %s289 = smul.u32 16, %s23
        %p290 = scmp.lt.s32.totalorder %s289, 31
        %s291 = scalar_select %p290, %s289, 31
        %s292 = smul.addr %s291, 2
        %s293 = smul.addr %s292, 4
        %s294 = scalar_lea.vmem %s1, %s293
        %s295 = smul.u32 16, %s23
        %s296 = smul.u32 16, %s23
        %s297 = smul.u32 16, %s23
        %v299 = vld [vmem:[%s294] sm:$0xff]
        %v300 = vld [vmem:[%s294 + $0x8] sm:$0xff]
        %v301 = vld [vmem:[%s294 + $0x10] sm:$0xff]
        %v302 = vld [vmem:[%s294 + $0x18] sm:$0xff]
        %v303 = vld [vmem:[%s294 + $0x20] sm:$0xff]
        %v304 = vld [vmem:[%s294 + $0x28] sm:$0xff]
        %v305 = vld [vmem:[%s294 + $0x30] sm:$0xff]
        %v306 = vld [vmem:[%s294 + $0x38] sm:$0xff]
        %v307 = vld [vmem:[%s294 + $0x40] sm:$0xff]
        %v308 = vld [vmem:[%s294 + $0x48] sm:$0xff]
        %v309 = vld [vmem:[%s294 + $0x50] sm:$0xff]
        %v310 = vld [vmem:[%s294 + $0x58] sm:$0xff]
        %v311 = vld [vmem:[%s294 + $0x60] sm:$0xff]
        %v312 = vld [vmem:[%s294 + $0x68] sm:$0xff]
        %v313 = vld [vmem:[%s294 + $0x70] sm:$0xff]
        %v314 = vld [vmem:[%s294 + $0x78] sm:$0xff]
        %v315 = vld [vmem:[%s0] sm:$0xf]
        %v316 = vld [vmem:[%s0 + $0x4] sm:$0xf]
        %v317 = vld [vmem:[%s0 + $0x8] sm:$0xf]
        %v318 = vld [vmem:[%s0 + $0xc] sm:$0xf]
        %v319 = vld [vmem:[%s0 + $0x10] sm:$0xf]
        %v320 = vld [vmem:[%s0 + $0x14] sm:$0xf]
        %v321 = vld [vmem:[%s0 + $0x18] sm:$0xf]
        %v322 = vld [vmem:[%s0 + $0x1c] sm:$0xf]
        %v323 = vld [vmem:[%s0 + $0x20] sm:$0xf]
        %v324 = vld [vmem:[%s0 + $0x24] sm:$0xf]
        %v325 = vld [vmem:[%s0 + $0x28] sm:$0xf]
        %v326 = vld [vmem:[%s0 + $0x2c] sm:$0xf]
        %v327 = vld [vmem:[%s0 + $0x30] sm:$0xf]
        %v328 = vld [vmem:[%s0 + $0x34] sm:$0xf]
        %v329 = vld [vmem:[%s0 + $0x38] sm:$0xf]
        %v330 = vld [vmem:[%s0 + $0x3c] sm:$0xf]
        %v331 = vld [vmem:[%s0 + $0x40] sm:$0xf]
        %v332 = vld [vmem:[%s0 + $0x44] sm:$0xf]
        %v333 = vld [vmem:[%s0 + $0x48] sm:$0xf]
        %v334 = vld [vmem:[%s0 + $0x4c] sm:$0xf]
        %v335 = vld [vmem:[%s0 + $0x50] sm:$0xf]
        %v336 = vld [vmem:[%s0 + $0x54] sm:$0xf]
        %v337 = vld [vmem:[%s0 + $0x58] sm:$0xf]
        %v338 = vld [vmem:[%s0 + $0x5c] sm:$0xf]
        %v339 = vld [vmem:[%s0 + $0x60] sm:$0xf]
        %v340 = vld [vmem:[%s0 + $0x64] sm:$0xf]
        %v341 = vld [vmem:[%s0 + $0x68] sm:$0xf]
        %v342 = vld [vmem:[%s0 + $0x6c] sm:$0xf]
        %v343 = vld [vmem:[%s0 + $0x70] sm:$0xf]
        %v344 = vld [vmem:[%s0 + $0x74] sm:$0xf]
        %v345 = vld [vmem:[%s0 + $0x78] sm:$0xf]
        %v346 = vld [vmem:[%s0 + $0x7c] sm:$0xf]
        %v363 = vunpack.c.l.b16 %v299
        %v364 = vunpack.c.h.b16 %v299
        %v365 = vunpack.c.l.b16 %v300
        %v366 = vunpack.c.h.b16 %v300
        %v367 = vunpack.c.l.b16 %v301
        %v368 = vunpack.c.h.b16 %v301
        %v369 = vunpack.c.l.b16 %v302
        %v370 = vunpack.c.h.b16 %v302
        %v371 = vunpack.c.l.b16 %v303
        %v372 = vunpack.c.h.b16 %v303
        %v373 = vunpack.c.l.b16 %v304
        %v374 = vunpack.c.h.b16 %v304
        %v375 = vunpack.c.l.b16 %v305
        %v376 = vunpack.c.h.b16 %v305
        %v377 = vunpack.c.l.b16 %v306
        %v378 = vunpack.c.h.b16 %v306
        %v379 = vunpack.c.l.b16 %v307
        %v380 = vunpack.c.h.b16 %v307
        %v381 = vunpack.c.l.b16 %v308
        %v382 = vunpack.c.h.b16 %v308
        %v383 = vunpack.c.l.b16 %v309
        %v384 = vunpack.c.h.b16 %v309
        %v385 = vunpack.c.l.b16 %v310
        %v386 = vunpack.c.h.b16 %v310
        %v387 = vunpack.c.l.b16 %v311
        %v388 = vunpack.c.h.b16 %v311
        %v389 = vunpack.c.l.b16 %v312
        %v390 = vunpack.c.h.b16 %v312
        %v391 = vunpack.c.l.b16 %v313
        %v392 = vunpack.c.h.b16 %v313
        %v393 = vunpack.c.l.b16 %v314
        %v394 = vunpack.c.h.b16 %v314
        %v395 = vpack.c.b16 %v365, %v363
        %v396 = vpack.c.b16 %v366, %v364
        %v397 = vpack.c.b16 %v369, %v367
        %v398 = vpack.c.b16 %v370, %v368
        %v399 = vpack.c.b16 %v373, %v371
        %v400 = vpack.c.b16 %v374, %v372
        %v401 = vpack.c.b16 %v377, %v375
        %v402 = vpack.c.b16 %v378, %v376
        %v403 = vpack.c.b16 %v381, %v379
        %v404 = vpack.c.b16 %v382, %v380
        %v405 = vpack.c.b16 %v385, %v383
        %v406 = vpack.c.b16 %v386, %v384
        %v407 = vpack.c.b16 %v389, %v387
        %v408 = vpack.c.b16 %v390, %v388
        %v409 = vpack.c.b16 %v393, %v391
        %v410 = vpack.c.b16 %v394, %v392
        %v459 = vunpack.c.l.b16 %v315
        %v460 = vunpack.c.l.b16 %v316
        %v461 = vunpack.c.l.b16 %v317
        %v462 = vunpack.c.l.b16 %v318
        %v463 = vunpack.c.l.b16 %v319
        %v464 = vunpack.c.l.b16 %v320
        %v465 = vunpack.c.l.b16 %v321
        %v466 = vunpack.c.l.b16 %v322
        %v467 = vunpack.c.l.b16 %v323
        %v468 = vunpack.c.l.b16 %v324
        %v469 = vunpack.c.l.b16 %v325
        %v470 = vunpack.c.l.b16 %v326
        %v471 = vunpack.c.l.b16 %v327
        %v472 = vunpack.c.l.b16 %v328
        %v473 = vunpack.c.l.b16 %v329
        %v474 = vunpack.c.l.b16 %v330
        %v475 = vunpack.c.l.b16 %v331
        %v476 = vunpack.c.l.b16 %v332
        %v477 = vunpack.c.l.b16 %v333
        %v478 = vunpack.c.l.b16 %v334
        %v479 = vunpack.c.l.b16 %v335
        %v480 = vunpack.c.l.b16 %v336
        %v481 = vunpack.c.l.b16 %v337
        %v482 = vunpack.c.l.b16 %v338
        %v483 = vunpack.c.l.b16 %v339
        %v484 = vunpack.c.l.b16 %v340
        %v485 = vunpack.c.l.b16 %v341
        %v486 = vunpack.c.l.b16 %v342
        %v487 = vunpack.c.l.b16 %v343
        %v488 = vunpack.c.l.b16 %v344
        %v489 = vunpack.c.l.b16 %v345
        %v490 = vunpack.c.l.b16 %v346
        %v491 = vpack.c.b16 %v460, %v459
        %v492 = vpack.c.b16 %v462, %v461
        %v493 = vpack.c.b16 %v464, %v463
        %v494 = vpack.c.b16 %v466, %v465
        %v495 = vpack.c.b16 %v468, %v467
        %v496 = vpack.c.b16 %v470, %v469
        %v497 = vpack.c.b16 %v472, %v471
        %v498 = vpack.c.b16 %v474, %v473
        %v499 = vpack.c.b16 %v476, %v475
        %v500 = vpack.c.b16 %v478, %v477
        %v501 = vpack.c.b16 %v480, %v479
        %v502 = vpack.c.b16 %v482, %v481
        %v503 = vpack.c.b16 %v484, %v483
        %v504 = vpack.c.b16 %v486, %v485
        %v505 = vpack.c.b16 %v488, %v487
        %v506 = vpack.c.b16 %v490, %v489
        %523 = vmatprep.subr.bf16.mxu0 0
        %524 = vmatpush1.bf16.msra.mxu0 %v491
        %525 = vmatprep.subr.bf16.mxu0 0
        %526 = vmatpush1.bf16.msra.mxu0 %v492
        %527 = vmatprep.subr.bf16.mxu0 0
        %528 = vmatpush1.bf16.msra.mxu0 %v493
        %529 = vmatprep.subr.bf16.mxu0 0
        %530 = vmatpush1.bf16.msra.mxu0 %v494
        %531 = vmatprep.subr.bf16.mxu0 0
        %532 = vmatpush1.bf16.msra.mxu0 %v495
        %533 = vmatprep.subr.bf16.mxu0 0
        %534 = vmatpush1.bf16.msra.mxu0 %v496
        %535 = vmatprep.subr.bf16.mxu0 0
        %536 = vmatpush1.bf16.msra.mxu0 %v497
        %537 = vmatprep.subr.bf16.mxu0 0
        %538 = vmatpush1.bf16.msra.mxu0 %v498
        %539 = vmatprep.subr.bf16.mxu0 0
        %540 = vmatpush1.bf16.msra.mxu0 %v499
        %541 = vmatprep.subr.bf16.mxu0 0
        %542 = vmatpush1.bf16.msra.mxu0 %v500
        %543 = vmatprep.subr.bf16.mxu0 0
        %544 = vmatpush1.bf16.msra.mxu0 %v501
        %545 = vmatprep.subr.bf16.mxu0 0
        %546 = vmatpush1.bf16.msra.mxu0 %v502
        %547 = vmatprep.subr.bf16.mxu0 0
        %548 = vmatpush1.bf16.msra.mxu0 %v503
        %549 = vmatprep.subr.bf16.mxu0 0
        %550 = vmatpush1.bf16.msra.mxu0 %v504
        %551 = vmatprep.subr.bf16.mxu0 0
        %552 = vmatpush1.bf16.msra.mxu0 %v505
        %553 = vmatprep.subr.bf16.mxu0 0
        %554 = vmatpush1.bf16.msra.mxu0 %v506
        %555 = vmatprep.mubr.bf16.mxu0 %v396
        %556 = vmatmul.mubr.bf16.gmra.mrb[0].mxu0 %v395
        %v557 = vpop.f32.mrb[0].mxu0
        %v558 = vadd.f32 0.0, %v557
        %v559 = vpop.f32.mrb[0].mxu0
        %v560 = vpop.f32.mrb[0].mxu0
        %v561 = vadd.f32 0.0, %v560
        %v562 = vpop.f32.mrb[0].mxu0
        %563 = vmatprep.mubr.bf16.mxu0 %v398
        %564 = vmatmul.mubr.bf16.gmra.mrb[0].mxu0 %v397
        %v565 = vpop.f32.mrb[0].mxu0
        %v566 = vadd.f32 0.0, %v565
        %v567 = vpop.f32.mrb[0].mxu0
        %v568 = vpop.f32.mrb[0].mxu0
        %v569 = vadd.f32 0.0, %v568
        %v570 = vpop.f32.mrb[0].mxu0
        %571 = vmatprep.mubr.bf16.mxu0 %v400
        %572 = vmatmul.mubr.bf16.gmra.mrb[0].mxu0 %v399
        %v573 = vpop.f32.mrb[0].mxu0
        %v574 = vadd.f32 0.0, %v573
        %v575 = vpop.f32.mrb[0].mxu0
        %v576 = vpop.f32.mrb[0].mxu0
        %v577 = vadd.f32 0.0, %v576
        %v578 = vpop.f32.mrb[0].mxu0
        %579 = vmatprep.mubr.bf16.mxu0 %v402
        %580 = vmatmul.mubr.bf16.gmra.mrb[0].mxu0 %v401
        %v581 = vpop.f32.mrb[0].mxu0
        %v582 = vadd.f32 0.0, %v581
        %v583 = vpop.f32.mrb[0].mxu0
        %v584 = vpop.f32.mrb[0].mxu0
        %v585 = vadd.f32 0.0, %v584
        %v586 = vpop.f32.mrb[0].mxu0
        %587 = vmatprep.mubr.bf16.mxu0 %v404
        %588 = vmatmul.mubr.bf16.gmra.mrb[0].mxu0 %v403
        %v589 = vpop.f32.mrb[0].mxu0
        %v590 = vadd.f32 0.0, %v589
        %v591 = vpop.f32.mrb[0].mxu0
        %v592 = vpop.f32.mrb[0].mxu0
        %v593 = vadd.f32 0.0, %v592
        %v594 = vpop.f32.mrb[0].mxu0
        %595 = vmatprep.mubr.bf16.mxu0 %v406
        %596 = vmatmul.mubr.bf16.gmra.mrb[0].mxu0 %v405
        %v597 = vpop.f32.mrb[0].mxu0
        %v598 = vadd.f32 0.0, %v597
        %v599 = vpop.f32.mrb[0].mxu0
        %v600 = vpop.f32.mrb[0].mxu0
        %v601 = vadd.f32 0.0, %v600
        %v602 = vpop.f32.mrb[0].mxu0
        %603 = vmatprep.mubr.bf16.mxu0 %v408
        %604 = vmatmul.mubr.bf16.gmra.mrb[0].mxu0 %v407
        %v605 = vpop.f32.mrb[0].mxu0
        %v606 = vadd.f32 0.0, %v605
        %v607 = vpop.f32.mrb[0].mxu0
        %v608 = vpop.f32.mrb[0].mxu0
        %v609 = vadd.f32 0.0, %v608
        %v610 = vpop.f32.mrb[0].mxu0
        %611 = vmatprep.mubr.bf16.mxu0 %v410
        %612 = vmatmul.mubr.bf16.gmra.mrb[0].mxu0 %v409
        %v613 = vpop.f32.mrb[0].mxu0
        %v614 = vadd.f32 0.0, %v613
        %v615 = vpop.f32.mrb[0].mxu0
        %v616 = vpop.f32.mrb[0].mxu0
        %v617 = vadd.f32 0.0, %v616
        %v618 = vpop.f32.mrb[0].mxu0
        %619 = vdwg.mxu0
        %v620 = vld [vmem:[%s254] sm:$0xff]
        %v621 = vld [vmem:[%s254 + $0x8] sm:$0xff]
        %v622 = vld [vmem:[%s254 + $0x10] sm:$0xf]
        %v623 = vld [vmem:[%s254 + $0x14] sm:$0xff]
        %v624 = vld [vmem:[%s254 + $0x1c] sm:$0xff]
        %v625 = vld [vmem:[%s254 + $0x24] sm:$0xf]
        %v626 = vld [vmem:[%s254 + $0x28] sm:$0xff]
        %v627 = vld [vmem:[%s254 + $0x30] sm:$0xff]
        %v628 = vld [vmem:[%s254 + $0x38] sm:$0xf]
        %v629 = vld [vmem:[%s254 + $0x3c] sm:$0xff]
        %v630 = vld [vmem:[%s254 + $0x44] sm:$0xff]
        %v631 = vld [vmem:[%s254 + $0x4c] sm:$0xf]
        %v632 = vld [vmem:[%s254 + $0x50] sm:$0xff]
        %v633 = vld [vmem:[%s254 + $0x58] sm:$0xff]
        %v634 = vld [vmem:[%s254 + $0x60] sm:$0xf]
        %v635 = vld [vmem:[%s254 + $0x64] sm:$0xff]
        %v636 = vld [vmem:[%s254 + $0x6c] sm:$0xff]
        %v637 = vld [vmem:[%s254 + $0x74] sm:$0xf]
        %v638 = vld [vmem:[%s254 + $0x78] sm:$0xff]
        %v639 = vld [vmem:[%s254 + $0x80] sm:$0xff]
        %v640 = vld [vmem:[%s254 + $0x88] sm:$0xf]
        %v641 = vld [vmem:[%s254 + $0x8c] sm:$0xff]
        %v642 = vld [vmem:[%s254 + $0x94] sm:$0xff]
        %v643 = vld [vmem:[%s254 + $0x9c] sm:$0xf]
        %v644 = vld [vmem:[%s254 + $0xa0] sm:$0xff]
        %v645 = vld [vmem:[%s254 + $0xa8] sm:$0xff]
        %v646 = vld [vmem:[%s254 + $0xb0] sm:$0xf]
        %v647 = vld [vmem:[%s254 + $0xb4] sm:$0xff]
        %v648 = vld [vmem:[%s254 + $0xbc] sm:$0xff]
        %v649 = vld [vmem:[%s254 + $0xc4] sm:$0xf]
        %v650 = vld [vmem:[%s254 + $0xc8] sm:$0xff]
        %v651 = vld [vmem:[%s254 + $0xd0] sm:$0xff]
        %v652 = vld [vmem:[%s254 + $0xd8] sm:$0xf]
        %v653 = vld [vmem:[%s254 + $0xdc] sm:$0xff]
        %v654 = vld [vmem:[%s254 + $0xe4] sm:$0xff]
        %v655 = vld [vmem:[%s254 + $0xec] sm:$0xf]
        %v656 = vld [vmem:[%s254 + $0xf0] sm:$0xff]
        %v657 = vld [vmem:[%s254 + $0xf8] sm:$0xff]
        %v658 = vld [vmem:[%s254 + $0x100] sm:$0xf]
        %v659 = vld [vmem:[%s254 + $0x104] sm:$0xff]
        %v660 = vld [vmem:[%s254 + $0x10c] sm:$0xff]
        %v661 = vld [vmem:[%s254 + $0x114] sm:$0xf]
        %v662 = vld [vmem:[%s254 + $0x118] sm:$0xff]
        %v663 = vld [vmem:[%s254 + $0x120] sm:$0xff]
        %v664 = vld [vmem:[%s254 + $0x128] sm:$0xf]
        %v665 = vld [vmem:[%s254 + $0x12c] sm:$0xff]
        %v666 = vld [vmem:[%s254 + $0x134] sm:$0xff]
        %v667 = vld [vmem:[%s254 + $0x13c] sm:$0xf]
        %v668 = vld [vmem:[%s3] sm:$0xf]
        %v669 = vld [vmem:[%s3 + $0x4] sm:$0xf]
        %v670 = vld [vmem:[%s3 + $0x8] sm:$0xf]
        %v671 = vld [vmem:[%s3 + $0xc] sm:$0xf]
        %v672 = vld [vmem:[%s3 + $0x10] sm:$0xf]
        %v673 = vld [vmem:[%s3 + $0x14] sm:$0xf]
        %v674 = vld [vmem:[%s3 + $0x18] sm:$0xf]
        %v675 = vld [vmem:[%s3 + $0x1c] sm:$0xf]
        %v676 = vld [vmem:[%s3 + $0x20] sm:$0xf]
        %v677 = vld [vmem:[%s3 + $0x24] sm:$0xf]
        %v678 = vld [vmem:[%s3 + $0x28] sm:$0xf]
        %v679 = vld [vmem:[%s3 + $0x2c] sm:$0xf]
        %v680 = vld [vmem:[%s3 + $0x30] sm:$0xf]
        %v681 = vld [vmem:[%s3 + $0x34] sm:$0xf]
        %v682 = vld [vmem:[%s3 + $0x38] sm:$0xf]
        %v683 = vld [vmem:[%s3 + $0x3c] sm:$0xf]
        %v684 = vld [vmem:[%s3 + $0x40] sm:$0xf]
        %v685 = vld [vmem:[%s3 + $0x44] sm:$0xf]
        %v686 = vld [vmem:[%s3 + $0x48] sm:$0xf]
        %v687 = vld [vmem:[%s3 + $0x4c] sm:$0xf]
        %v688 = vld [vmem:[%s3 + $0x50] sm:$0xf]
        %v689 = vld [vmem:[%s3 + $0x54] sm:$0xf]
        %v690 = vld [vmem:[%s3 + $0x58] sm:$0xf]
        %v691 = vld [vmem:[%s3 + $0x5c] sm:$0xf]
        %v692 = vld [vmem:[%s3 + $0x60] sm:$0xf]
        %v693 = vld [vmem:[%s3 + $0x64] sm:$0xf]
        %v694 = vld [vmem:[%s3 + $0x68] sm:$0xf]
        %v695 = vld [vmem:[%s3 + $0x6c] sm:$0xf]
        %v696 = vld [vmem:[%s3 + $0x70] sm:$0xf]
        %v697 = vld [vmem:[%s3 + $0x74] sm:$0xf]
        %v698 = vld [vmem:[%s3 + $0x78] sm:$0xf]
        %v699 = vld [vmem:[%s3 + $0x7c] sm:$0xf]
        %v700 = vld [vmem:[%s3 + $0x80] sm:$0xf]
        %v701 = vld [vmem:[%s3 + $0x84] sm:$0xf]
        %v702 = vld [vmem:[%s3 + $0x88] sm:$0xf]
        %v703 = vld [vmem:[%s3 + $0x8c] sm:$0xf]
        %v704 = vld [vmem:[%s3 + $0x90] sm:$0xf]
        %v705 = vld [vmem:[%s3 + $0x94] sm:$0xf]
        %v706 = vld [vmem:[%s3 + $0x98] sm:$0xf]
        %v707 = vld [vmem:[%s3 + $0x9c] sm:$0xf]
        %v708 = vld [vmem:[%s3 + $0xa0] sm:$0xf]
        %v709 = vld [vmem:[%s3 + $0xa4] sm:$0xf]
        %v710 = vld [vmem:[%s3 + $0xa8] sm:$0xf]
        %v711 = vld [vmem:[%s3 + $0xac] sm:$0xf]
        %v712 = vld [vmem:[%s3 + $0xb0] sm:$0xf]
        %v713 = vld [vmem:[%s3 + $0xb4] sm:$0xf]
        %v714 = vld [vmem:[%s3 + $0xb8] sm:$0xf]
        %v715 = vld [vmem:[%s3 + $0xbc] sm:$0xf]
        %v716 = vld [vmem:[%s3 + $0xc0] sm:$0xf]
        %v717 = vld [vmem:[%s3 + $0xc4] sm:$0xf]
        %v718 = vld [vmem:[%s3 + $0xc8] sm:$0xf]
        %v719 = vld [vmem:[%s3 + $0xcc] sm:$0xf]
        %v720 = vld [vmem:[%s3 + $0xd0] sm:$0xf]
        %v721 = vld [vmem:[%s3 + $0xd4] sm:$0xf]
        %v722 = vld [vmem:[%s3 + $0xd8] sm:$0xf]
        %v723 = vld [vmem:[%s3 + $0xdc] sm:$0xf]
        %v724 = vld [vmem:[%s3 + $0xe0] sm:$0xf]
        %v725 = vld [vmem:[%s3 + $0xe4] sm:$0xf]
        %v726 = vld [vmem:[%s3 + $0xe8] sm:$0xf]
        %v727 = vld [vmem:[%s3 + $0xec] sm:$0xf]
        %v728 = vld [vmem:[%s3 + $0xf0] sm:$0xf]
        %v729 = vld [vmem:[%s3 + $0xf4] sm:$0xf]
        %v730 = vld [vmem:[%s3 + $0xf8] sm:$0xf]
        %v731 = vld [vmem:[%s3 + $0xfc] sm:$0xf]
        %v732 = vld [vmem:[%s3 + $0x100] sm:$0xf]
        %v733 = vld [vmem:[%s3 + $0x104] sm:$0xf]
        %v734 = vld [vmem:[%s3 + $0x108] sm:$0xf]
        %v735 = vld [vmem:[%s3 + $0x10c] sm:$0xf]
        %v736 = vld [vmem:[%s3 + $0x110] sm:$0xf]
        %v737 = vld [vmem:[%s3 + $0x114] sm:$0xf]
        %v738 = vld [vmem:[%s3 + $0x118] sm:$0xf]
        %v739 = vld [vmem:[%s3 + $0x11c] sm:$0xf]
        %v740 = vld [vmem:[%s3 + $0x120] sm:$0xf]
        %v741 = vld [vmem:[%s3 + $0x124] sm:$0xf]
        %v742 = vld [vmem:[%s3 + $0x128] sm:$0xf]
        %v743 = vld [vmem:[%s3 + $0x12c] sm:$0xf]
        %v744 = vld [vmem:[%s3 + $0x130] sm:$0xf]
        %v745 = vld [vmem:[%s3 + $0x134] sm:$0xf]
        %v746 = vld [vmem:[%s3 + $0x138] sm:$0xf]
        %v747 = vld [vmem:[%s3 + $0x13c] sm:$0xf]
        %v796 = vunpack.c.l.b16 %v620
        %v797 = vunpack.c.h.b16 %v620
        %v798 = vunpack.c.l.b16 %v621
        %v799 = vunpack.c.h.b16 %v621
        %v800 = vunpack.c.l.b16 %v622
        %v801 = vunpack.c.l.b16 %v623
        %v802 = vunpack.c.h.b16 %v623
        %v803 = vunpack.c.l.b16 %v624
        %v804 = vunpack.c.h.b16 %v624
        %v805 = vunpack.c.l.b16 %v625
        %v806 = vunpack.c.l.b16 %v626
        %v807 = vunpack.c.h.b16 %v626
        %v808 = vunpack.c.l.b16 %v627
        %v809 = vunpack.c.h.b16 %v627
        %v810 = vunpack.c.l.b16 %v628
        %v811 = vunpack.c.l.b16 %v629
        %v812 = vunpack.c.h.b16 %v629
        %v813 = vunpack.c.l.b16 %v630
        %v814 = vunpack.c.h.b16 %v630
        %v815 = vunpack.c.l.b16 %v631
        %v816 = vunpack.c.l.b16 %v632
        %v817 = vunpack.c.h.b16 %v632
        %v818 = vunpack.c.l.b16 %v633
        %v819 = vunpack.c.h.b16 %v633
        %v820 = vunpack.c.l.b16 %v634
        %v821 = vunpack.c.l.b16 %v635
        %v822 = vunpack.c.h.b16 %v635
        %v823 = vunpack.c.l.b16 %v636
        %v824 = vunpack.c.h.b16 %v636
        %v825 = vunpack.c.l.b16 %v637
        %v826 = vunpack.c.l.b16 %v638
        %v827 = vunpack.c.h.b16 %v638
        %v828 = vunpack.c.l.b16 %v639
        %v829 = vunpack.c.h.b16 %v639
        %v830 = vunpack.c.l.b16 %v640
        %v831 = vunpack.c.l.b16 %v641
        %v832 = vunpack.c.h.b16 %v641
        %v833 = vunpack.c.l.b16 %v642
        %v834 = vunpack.c.h.b16 %v642
        %v835 = vunpack.c.l.b16 %v643
        %v836 = vunpack.c.l.b16 %v644
        %v837 = vunpack.c.h.b16 %v644
        %v838 = vunpack.c.l.b16 %v645
        %v839 = vunpack.c.h.b16 %v645
        %v840 = vunpack.c.l.b16 %v646
        %v841 = vunpack.c.l.b16 %v647
        %v842 = vunpack.c.h.b16 %v647
        %v843 = vunpack.c.l.b16 %v648
        %v844 = vunpack.c.h.b16 %v648
        %v845 = vunpack.c.l.b16 %v649
        %v846 = vunpack.c.l.b16 %v650
        %v847 = vunpack.c.h.b16 %v650
        %v848 = vunpack.c.l.b16 %v651
        %v849 = vunpack.c.h.b16 %v651
        %v850 = vunpack.c.l.b16 %v652
        %v851 = vunpack.c.l.b16 %v653
        %v852 = vunpack.c.h.b16 %v653
        %v853 = vunpack.c.l.b16 %v654
        %v854 = vunpack.c.h.b16 %v654
        %v855 = vunpack.c.l.b16 %v655
        %v856 = vunpack.c.l.b16 %v656
        %v857 = vunpack.c.h.b16 %v656
        %v858 = vunpack.c.l.b16 %v657
        %v859 = vunpack.c.h.b16 %v657
        %v860 = vunpack.c.l.b16 %v658
        %v861 = vunpack.c.l.b16 %v659
        %v862 = vunpack.c.h.b16 %v659
        %v863 = vunpack.c.l.b16 %v660
        %v864 = vunpack.c.h.b16 %v660
        %v865 = vunpack.c.l.b16 %v661
        %v866 = vunpack.c.l.b16 %v662
        %v867 = vunpack.c.h.b16 %v662
        %v868 = vunpack.c.l.b16 %v663
        %v869 = vunpack.c.h.b16 %v663
        %v870 = vunpack.c.l.b16 %v664
        %v871 = vunpack.c.l.b16 %v665
        %v872 = vunpack.c.h.b16 %v665
        %v873 = vunpack.c.l.b16 %v666
        %v874 = vunpack.c.h.b16 %v666
        %v875 = vunpack.c.l.b16 %v667
        %v876 = vpack.c.b16 %v801, %v796
        %v877 = vpack.c.b16 %v802, %v797
        %v878 = vpack.c.b16 %v803, %v798
        %v879 = vpack.c.b16 %v804, %v799
        %v880 = vpack.c.b16 %v805, %v800
        %v881 = vpack.c.b16 %v811, %v806
        %v882 = vpack.c.b16 %v812, %v807
        %v883 = vpack.c.b16 %v813, %v808
        %v884 = vpack.c.b16 %v814, %v809
        %v885 = vpack.c.b16 %v815, %v810
        %v886 = vpack.c.b16 %v821, %v816
        %v887 = vpack.c.b16 %v822, %v817
        %v888 = vpack.c.b16 %v823, %v818
        %v889 = vpack.c.b16 %v824, %v819
        %v890 = vpack.c.b16 %v825, %v820
        %v891 = vpack.c.b16 %v831, %v826
        %v892 = vpack.c.b16 %v832, %v827
        %v893 = vpack.c.b16 %v833, %v828
        %v894 = vpack.c.b16 %v834, %v829
        %v895 = vpack.c.b16 %v835, %v830
        %v896 = vpack.c.b16 %v841, %v836
        %v897 = vpack.c.b16 %v842, %v837
        %v898 = vpack.c.b16 %v843, %v838
        %v899 = vpack.c.b16 %v844, %v839
        %v900 = vpack.c.b16 %v845, %v840
        %v901 = vpack.c.b16 %v851, %v846
        %v902 = vpack.c.b16 %v852, %v847
        %v903 = vpack.c.b16 %v853, %v848
        %v904 = vpack.c.b16 %v854, %v849
        %v905 = vpack.c.b16 %v855, %v850
        %v906 = vpack.c.b16 %v861, %v856
        %v907 = vpack.c.b16 %v862, %v857
        %v908 = vpack.c.b16 %v863, %v858
        %v909 = vpack.c.b16 %v864, %v859
        %v910 = vpack.c.b16 %v865, %v860
        %v911 = vpack.c.b16 %v871, %v866
        %v912 = vpack.c.b16 %v872, %v867
        %v913 = vpack.c.b16 %v873, %v868
        %v914 = vpack.c.b16 %v874, %v869
        %v915 = vpack.c.b16 %v875, %v870
        %v1036 = vunpack.c.l.b16 %v668
        %v1037 = vunpack.c.l.b16 %v669
        %v1038 = vunpack.c.l.b16 %v670
        %v1039 = vunpack.c.l.b16 %v671
        %v1040 = vunpack.c.l.b16 %v672
        %v1041 = vunpack.c.l.b16 %v673
        %v1042 = vunpack.c.l.b16 %v674
        %v1043 = vunpack.c.l.b16 %v675
        %v1044 = vunpack.c.l.b16 %v676
        %v1045 = vunpack.c.l.b16 %v677
        %v1046 = vunpack.c.l.b16 %v678
        %v1047 = vunpack.c.l.b16 %v679
        %v1048 = vunpack.c.l.b16 %v680
        %v1049 = vunpack.c.l.b16 %v681
        %v1050 = vunpack.c.l.b16 %v682
        %v1051 = vunpack.c.l.b16 %v683
        %v1052 = vunpack.c.l.b16 %v684
        %v1053 = vunpack.c.l.b16 %v685
        %v1054 = vunpack.c.l.b16 %v686
        %v1055 = vunpack.c.l.b16 %v687
        %v1056 = vunpack.c.l.b16 %v688
        %v1057 = vunpack.c.l.b16 %v689
        %v1058 = vunpack.c.l.b16 %v690
        %v1059 = vunpack.c.l.b16 %v691
        %v1060 = vunpack.c.l.b16 %v692
        %v1061 = vunpack.c.l.b16 %v693
        %v1062 = vunpack.c.l.b16 %v694
        %v1063 = vunpack.c.l.b16 %v695
        %v1064 = vunpack.c.l.b16 %v696
        %v1065 = vunpack.c.l.b16 %v697
        %v1066 = vunpack.c.l.b16 %v698
        %v1067 = vunpack.c.l.b16 %v699
        %v1068 = vunpack.c.l.b16 %v700
        %v1069 = vunpack.c.l.b16 %v701
        %v1070 = vunpack.c.l.b16 %v702
        %v1071 = vunpack.c.l.b16 %v703
        %v1072 = vunpack.c.l.b16 %v704
        %v1073 = vunpack.c.l.b16 %v705
        %v1074 = vunpack.c.l.b16 %v706
        %v1075 = vunpack.c.l.b16 %v707
        %v1076 = vunpack.c.l.b16 %v708
        %v1077 = vunpack.c.l.b16 %v709
        %v1078 = vunpack.c.l.b16 %v710
        %v1079 = vunpack.c.l.b16 %v711
        %v1080 = vunpack.c.l.b16 %v712
        %v1081 = vunpack.c.l.b16 %v713
        %v1082 = vunpack.c.l.b16 %v714
        %v1083 = vunpack.c.l.b16 %v715
        %v1084 = vunpack.c.l.b16 %v716
        %v1085 = vunpack.c.l.b16 %v717
        %v1086 = vunpack.c.l.b16 %v718
        %v1087 = vunpack.c.l.b16 %v719
        %v1088 = vunpack.c.l.b16 %v720
        %v1089 = vunpack.c.l.b16 %v721
        %v1090 = vunpack.c.l.b16 %v722
        %v1091 = vunpack.c.l.b16 %v723
        %v1092 = vunpack.c.l.b16 %v724
        %v1093 = vunpack.c.l.b16 %v725
        %v1094 = vunpack.c.l.b16 %v726
        %v1095 = vunpack.c.l.b16 %v727
        %v1096 = vunpack.c.l.b16 %v728
        %v1097 = vunpack.c.l.b16 %v729
        %v1098 = vunpack.c.l.b16 %v730
        %v1099 = vunpack.c.l.b16 %v731
        %v1100 = vunpack.c.l.b16 %v732
        %v1101 = vunpack.c.l.b16 %v733
        %v1102 = vunpack.c.l.b16 %v734
        %v1103 = vunpack.c.l.b16 %v735
        %v1104 = vunpack.c.l.b16 %v736
        %v1105 = vunpack.c.l.b16 %v737
        %v1106 = vunpack.c.l.b16 %v738
        %v1107 = vunpack.c.l.b16 %v739
        %v1108 = vunpack.c.l.b16 %v740
        %v1109 = vunpack.c.l.b16 %v741
        %v1110 = vunpack.c.l.b16 %v742
        %v1111 = vunpack.c.l.b16 %v743
        %v1112 = vunpack.c.l.b16 %v744
        %v1113 = vunpack.c.l.b16 %v745
        %v1114 = vunpack.c.l.b16 %v746
        %v1115 = vunpack.c.l.b16 %v747
        %v1116 = vpack.c.b16 %v1037, %v1036
        %v1117 = vpack.c.b16 %v1039, %v1038
        %v1118 = vpack.c.b16 %v1041, %v1040
        %v1119 = vpack.c.b16 %v1043, %v1042
        %v1120 = vpack.c.b16 %v1045, %v1044
        %v1121 = vpack.c.b16 %v1047, %v1046
        %v1122 = vpack.c.b16 %v1049, %v1048
        %v1123 = vpack.c.b16 %v1051, %v1050
        %v1124 = vpack.c.b16 %v1053, %v1052
        %v1125 = vpack.c.b16 %v1055, %v1054
        %v1126 = vpack.c.b16 %v1057, %v1056
        %v1127 = vpack.c.b16 %v1059, %v1058
        %v1128 = vpack.c.b16 %v1061, %v1060
        %v1129 = vpack.c.b16 %v1063, %v1062
        %v1130 = vpack.c.b16 %v1065, %v1064
        %v1131 = vpack.c.b16 %v1067, %v1066
        %v1132 = vpack.c.b16 %v1069, %v1068
        %v1133 = vpack.c.b16 %v1071, %v1070
        %v1134 = vpack.c.b16 %v1073, %v1072
        %v1135 = vpack.c.b16 %v1075, %v1074
        %v1136 = vpack.c.b16 %v1077, %v1076
        %v1137 = vpack.c.b16 %v1079, %v1078
        %v1138 = vpack.c.b16 %v1081, %v1080
        %v1139 = vpack.c.b16 %v1083, %v1082
        %v1140 = vpack.c.b16 %v1085, %v1084
        %v1141 = vpack.c.b16 %v1087, %v1086
        %v1142 = vpack.c.b16 %v1089, %v1088
        %v1143 = vpack.c.b16 %v1091, %v1090
        %v1144 = vpack.c.b16 %v1093, %v1092
        %v1145 = vpack.c.b16 %v1095, %v1094
        %v1146 = vpack.c.b16 %v1097, %v1096
        %v1147 = vpack.c.b16 %v1099, %v1098
        %v1148 = vpack.c.b16 %v1101, %v1100
        %v1149 = vpack.c.b16 %v1103, %v1102
        %v1150 = vpack.c.b16 %v1105, %v1104
        %v1151 = vpack.c.b16 %v1107, %v1106
        %v1152 = vpack.c.b16 %v1109, %v1108
        %v1153 = vpack.c.b16 %v1111, %v1110
        %v1154 = vpack.c.b16 %v1113, %v1112
        %v1155 = vpack.c.b16 %v1115, %v1114
        %1196 = vmatprep.subr.bf16.mxu0 0
        %1197 = vmatpush1.bf16.msra.mxu0 %v1116
        %1198 = vmatprep.subr.bf16.mxu0 0
        %1199 = vmatpush1.bf16.msra.mxu0 %v1117
        %1200 = vmatprep.subr.bf16.mxu0 0
        %1201 = vmatpush1.bf16.msra.mxu0 %v1118
        %1202 = vmatprep.subr.bf16.mxu0 0
        %1203 = vmatpush1.bf16.msra.mxu0 %v1119
        %1204 = vmatprep.subr.bf16.mxu0 0
        %1205 = vmatpush1.bf16.msra.mxu0 %v1120
        %1206 = vmatprep.subr.bf16.mxu0 0
        %1207 = vmatpush1.bf16.msra.mxu0 %v1121
        %1208 = vmatprep.subr.bf16.mxu0 0
        %1209 = vmatpush1.bf16.msra.mxu0 %v1122
        %1210 = vmatprep.subr.bf16.mxu0 0
        %1211 = vmatpush1.bf16.msra.mxu0 %v1123
        %1212 = vmatprep.subr.bf16.mxu0 0
        %1213 = vmatpush1.bf16.msra.mxu0 %v1124
        %1214 = vmatprep.subr.bf16.mxu0 0
        %1215 = vmatpush1.bf16.msra.mxu0 %v1125
        %1216 = vmatprep.subr.bf16.mxu0 0
        %1217 = vmatpush1.bf16.msra.mxu0 %v1126
        %1218 = vmatprep.subr.bf16.mxu0 0
        %1219 = vmatpush1.bf16.msra.mxu0 %v1127
        %1220 = vmatprep.subr.bf16.mxu0 0
        %1221 = vmatpush1.bf16.msra.mxu0 %v1128
        %1222 = vmatprep.subr.bf16.mxu0 0
        %1223 = vmatpush1.bf16.msra.mxu0 %v1129
        %1224 = vmatprep.subr.bf16.mxu0 0
        %1225 = vmatpush1.bf16.msra.mxu0 %v1130
        %1226 = vmatprep.subr.bf16.mxu0 0
        %1227 = vmatpush1.bf16.msra.mxu0 %v1131
        %1228 = vmatprep.mubr.bf16.mxu0 %v877
        %1229 = vmatmul.mubr.bf16.gmra.mrb[0].mxu0 %v876
        %v1230 = vpop.f32.mrb[0].mxu0
        %v1231 = vadd.f32 0.0, %v1230
        %v1232 = vpop.f32.mrb[0].mxu0
        %v1233 = vpop.f32.mrb[0].mxu0
        %v1234 = vadd.f32 0.0, %v1233
        %v1235 = vpop.f32.mrb[0].mxu0
        %1236 = vmatprep.mubr.bf16.mxu0 %v882
        %1237 = vmatmul.mubr.bf16.gmra.mrb[0].mxu0 %v881
        %v1238 = vpop.f32.mrb[0].mxu0
        %v1239 = vadd.f32 0.0, %v1238
        %v1240 = vpop.f32.mrb[0].mxu0
        %v1241 = vpop.f32.mrb[0].mxu0
        %v1242 = vadd.f32 0.0, %v1241
        %v1243 = vpop.f32.mrb[0].mxu0
        %1244 = vmatprep.mubr.bf16.mxu0 %v887
        %1245 = vmatmul.mubr.bf16.gmra.mrb[0].mxu0 %v886
        %v1246 = vpop.f32.mrb[0].mxu0
        %v1247 = vadd.f32 0.0, %v1246
        %v1248 = vpop.f32.mrb[0].mxu0
        %v1249 = vpop.f32.mrb[0].mxu0
        %v1250 = vadd.f32 0.0, %v1249
        %v1251 = vpop.f32.mrb[0].mxu0
        %1252 = vmatprep.mubr.bf16.mxu0 %v892
        %1253 = vmatmul.mubr.bf16.gmra.mrb[0].mxu0 %v891
        %v1254 = vpop.f32.mrb[0].mxu0
        %v1255 = vadd.f32 0.0, %v1254
        %v1256 = vpop.f32.mrb[0].mxu0
        %v1257 = vpop.f32.mrb[0].mxu0
        %v1258 = vadd.f32 0.0, %v1257
        %v1259 = vpop.f32.mrb[0].mxu0
        %1260 = vmatprep.mubr.bf16.mxu0 %v897
        %1261 = vmatmul.mubr.bf16.gmra.mrb[0].mxu0 %v896
        %v1262 = vpop.f32.mrb[0].mxu0
        %v1263 = vadd.f32 0.0, %v1262
        %v1264 = vpop.f32.mrb[0].mxu0
        %v1265 = vpop.f32.mrb[0].mxu0
        %v1266 = vadd.f32 0.0, %v1265
        %v1267 = vpop.f32.mrb[0].mxu0
        %1268 = vmatprep.mubr.bf16.mxu0 %v902
        %1269 = vmatmul.mubr.bf16.gmra.mrb[0].mxu0 %v901
        %v1270 = vpop.f32.mrb[0].mxu0
        %v1271 = vadd.f32 0.0, %v1270
        %v1272 = vpop.f32.mrb[0].mxu0
        %v1273 = vpop.f32.mrb[0].mxu0
        %v1274 = vadd.f32 0.0, %v1273
        %v1275 = vpop.f32.mrb[0].mxu0
        %1276 = vmatprep.mubr.bf16.mxu0 %v907
        %1277 = vmatmul.mubr.bf16.gmra.mrb[0].mxu0 %v906
        %v1278 = vpop.f32.mrb[0].mxu0
        %v1279 = vadd.f32 0.0, %v1278
        %v1280 = vpop.f32.mrb[0].mxu0
        %v1281 = vpop.f32.mrb[0].mxu0
        %v1282 = vadd.f32 0.0, %v1281
        %v1283 = vpop.f32.mrb[0].mxu0
        %1284 = vmatprep.mubr.bf16.mxu0 %v912
        %1285 = vmatmul.mubr.bf16.gmra.mrb[0].mxu0 %v911
        %v1286 = vpop.f32.mrb[0].mxu0
        %v1287 = vadd.f32 0.0, %v1286
        %v1288 = vpop.f32.mrb[0].mxu0
        %v1289 = vpop.f32.mrb[0].mxu0
        %v1290 = vadd.f32 0.0, %v1289
        %v1291 = vpop.f32.mrb[0].mxu0
        %1292 = vdwg.mxu0
        %1293 = vmatprep.subr.bf16.mxu0 0
        %1294 = vmatpush1.bf16.msra.mxu0 %v1132
        %1295 = vmatprep.subr.bf16.mxu0 0
        %1296 = vmatpush1.bf16.msra.mxu0 %v1133
        %1297 = vmatprep.subr.bf16.mxu0 0
        %1298 = vmatpush1.bf16.msra.mxu0 %v1134
        %1299 = vmatprep.subr.bf16.mxu0 0
        %1300 = vmatpush1.bf16.msra.mxu0 %v1135
        %1301 = vmatprep.subr.bf16.mxu0 0
        %1302 = vmatpush1.bf16.msra.mxu0 %v1136
        %1303 = vmatprep.subr.bf16.mxu0 0
        %1304 = vmatpush1.bf16.msra.mxu0 %v1137
        %1305 = vmatprep.subr.bf16.mxu0 0
        %1306 = vmatpush1.bf16.msra.mxu0 %v1138
        %1307 = vmatprep.subr.bf16.mxu0 0
        %1308 = vmatpush1.bf16.msra.mxu0 %v1139
        %1309 = vmatprep.subr.bf16.mxu0 0
        %1310 = vmatpush1.bf16.msra.mxu0 %v1140
        %1311 = vmatprep.subr.bf16.mxu0 0
        %1312 = vmatpush1.bf16.msra.mxu0 %v1141
        %1313 = vmatprep.subr.bf16.mxu0 0
        %1314 = vmatpush1.bf16.msra.mxu0 %v1142
        %1315 = vmatprep.subr.bf16.mxu0 0
        %1316 = vmatpush1.bf16.msra.mxu0 %v1143
        %1317 = vmatprep.subr.bf16.mxu0 0
        %1318 = vmatpush1.bf16.msra.mxu0 %v1144
        %1319 = vmatprep.subr.bf16.mxu0 0
        %1320 = vmatpush1.bf16.msra.mxu0 %v1145
        %1321 = vmatprep.subr.bf16.mxu0 0
        %1322 = vmatpush1.bf16.msra.mxu0 %v1146
        %1323 = vmatprep.subr.bf16.mxu0 0
        %1324 = vmatpush1.bf16.msra.mxu0 %v1147
        %1325 = vmatprep.mubr.bf16.mxu0 %v879
        %1326 = vmatmul.mubr.bf16.gmra.mrb[0].mxu0 %v878
        %v1327 = vpop.f32.mrb[0].mxu0
        %v1328 = vadd.f32 %v1231, %v1327
        %v1329 = vpop.f32.mrb[0].mxu0
        %v1330 = vpop.f32.mrb[0].mxu0
        %v1331 = vadd.f32 %v1234, %v1330
        %v1332 = vpop.f32.mrb[0].mxu0
        %1333 = vmatprep.mubr.bf16.mxu0 %v884
        %1334 = vmatmul.mubr.bf16.gmra.mrb[0].mxu0 %v883
        %v1335 = vpop.f32.mrb[0].mxu0
        %v1336 = vadd.f32 %v1239, %v1335
        %v1337 = vpop.f32.mrb[0].mxu0
        %v1338 = vpop.f32.mrb[0].mxu0
        %v1339 = vadd.f32 %v1242, %v1338
        %v1340 = vpop.f32.mrb[0].mxu0
        %1341 = vmatprep.mubr.bf16.mxu0 %v889
        %1342 = vmatmul.mubr.bf16.gmra.mrb[0].mxu0 %v888
        %v1343 = vpop.f32.mrb[0].mxu0
        %v1344 = vadd.f32 %v1247, %v1343
        %v1345 = vpop.f32.mrb[0].mxu0
        %v1346 = vpop.f32.mrb[0].mxu0
        %v1347 = vadd.f32 %v1250, %v1346
        %v1348 = vpop.f32.mrb[0].mxu0
        %1349 = vmatprep.mubr.bf16.mxu0 %v894
        %1350 = vmatmul.mubr.bf16.gmra.mrb[0].mxu0 %v893
        %v1351 = vpop.f32.mrb[0].mxu0
        %v1352 = vadd.f32 %v1255, %v1351
        %v1353 = vpop.f32.mrb[0].mxu0
        %v1354 = vpop.f32.mrb[0].mxu0
        %v1355 = vadd.f32 %v1258, %v1354
        %v1356 = vpop.f32.mrb[0].mxu0
        %1357 = vmatprep.mubr.bf16.mxu0 %v899
        %1358 = vmatmul.mubr.bf16.gmra.mrb[0].mxu0 %v898
        %v1359 = vpop.f32.mrb[0].mxu0
        %v1360 = vadd.f32 %v1263, %v1359
        %v1361 = vpop.f32.mrb[0].mxu0
        %v1362 = vpop.f32.mrb[0].mxu0
        %v1363 = vadd.f32 %v1266, %v1362
        %v1364 = vpop.f32.mrb[0].mxu0
        %1365 = vmatprep.mubr.bf16.mxu0 %v904
        %1366 = vmatmul.mubr.bf16.gmra.mrb[0].mxu0 %v903
        %v1367 = vpop.f32.mrb[0].mxu0
        %v1368 = vadd.f32 %v1271, %v1367
        %v1369 = vpop.f32.mrb[0].mxu0
        %v1370 = vpop.f32.mrb[0].mxu0
        %v1371 = vadd.f32 %v1274, %v1370
        %v1372 = vpop.f32.mrb[0].mxu0
        %1373 = vmatprep.mubr.bf16.mxu0 %v909
        %1374 = vmatmul.mubr.bf16.gmra.mrb[0].mxu0 %v908
        %v1375 = vpop.f32.mrb[0].mxu0
        %v1376 = vadd.f32 %v1279, %v1375
        %v1377 = vpop.f32.mrb[0].mxu0
        %v1378 = vpop.f32.mrb[0].mxu0
        %v1379 = vadd.f32 %v1282, %v1378
        %v1380 = vpop.f32.mrb[0].mxu0
        %1381 = vmatprep.mubr.bf16.mxu0 %v914
        %1382 = vmatmul.mubr.bf16.gmra.mrb[0].mxu0 %v913
        %v1383 = vpop.f32.mrb[0].mxu0
        %v1384 = vadd.f32 %v1287, %v1383
        %v1385 = vpop.f32.mrb[0].mxu0
        %v1386 = vpop.f32.mrb[0].mxu0
        %v1387 = vadd.f32 %v1290, %v1386
        %v1388 = vpop.f32.mrb[0].mxu0
        %1389 = vdwg.mxu0
        %1390 = vmatprep.subr.bf16.mxu0 0
        %1391 = vmatpush1.bf16.msra.mxu0 %v1148
        %1392 = vmatprep.subr.bf16.mxu0 0
        %1393 = vmatpush1.bf16.msra.mxu0 %v1149
        %1394 = vmatprep.subr.bf16.mxu0 0
        %1395 = vmatpush1.bf16.msra.mxu0 %v1150
        %1396 = vmatprep.subr.bf16.mxu0 0
        %1397 = vmatpush1.bf16.msra.mxu0 %v1151
        %1398 = vmatprep.subr.bf16.mxu0 0
        %1399 = vmatpush1.bf16.msra.mxu0 %v1152
        %1400 = vmatprep.subr.bf16.mxu0 0
        %1401 = vmatpush1.bf16.msra.mxu0 %v1153
        %1402 = vmatprep.subr.bf16.mxu0 0
        %1403 = vmatpush1.bf16.msra.mxu0 %v1154
        %1404 = vmatprep.subr.bf16.mxu0 0
        %1405 = vmatpush1.bf16.msra.mxu0 %v1155
        %1406 = vmatprep.subr.bf16.mxu0 0
        %1407 = vmatpush1.bf16.msra.mxu0 0
        %1408 = vmatprep.subr.bf16.mxu0 0
        %1409 = vmatpush1.bf16.msra.mxu0 0
        %1410 = vmatprep.subr.bf16.mxu0 0
        %1411 = vmatpush1.bf16.msra.mxu0 0
        %1412 = vmatprep.subr.bf16.mxu0 0
        %1413 = vmatpush1.bf16.msra.mxu0 0
        %1414 = vmatprep.subr.bf16.mxu0 0
        %1415 = vmatpush1.bf16.msra.mxu0 0
        %1416 = vmatprep.subr.bf16.mxu0 0
        %1417 = vmatpush1.bf16.msra.mxu0 0
        %1418 = vmatprep.subr.bf16.mxu0 0
        %1419 = vmatpush1.bf16.msra.mxu0 0
        %1420 = vmatprep.subr.bf16.mxu0 0
        %1421 = vmatpush1.bf16.msra.mxu0 0
        %1422 = vmatprep.mubr.bf16.mxu0 0
        %1423 = vmatmul.mubr.bf16.gmra.mrb[0].mxu0 %v880
        %v1424 = vpop.f32.mrb[0].mxu0
        %v1425 = vadd.f32 %v1328, %v1424
        %v1426 = vpop.f32.mrb[0].mxu0
        %v1427 = vpop.f32.mrb[0].mxu0
        %v1428 = vadd.f32 %v1331, %v1427
        %v1429 = vpop.f32.mrb[0].mxu0
        %1430 = vmatprep.mubr.bf16.mxu0 0
        %1431 = vmatmul.mubr.bf16.gmra.mrb[0].mxu0 %v885
        %v1432 = vpop.f32.mrb[0].mxu0
        %v1433 = vadd.f32 %v1336, %v1432
        %v1434 = vpop.f32.mrb[0].mxu0
        %v1435 = vpop.f32.mrb[0].mxu0
        %v1436 = vadd.f32 %v1339, %v1435
        %v1437 = vpop.f32.mrb[0].mxu0
        %1438 = vmatprep.mubr.bf16.mxu0 0
        %1439 = vmatmul.mubr.bf16.gmra.mrb[0].mxu0 %v890
        %v1440 = vpop.f32.mrb[0].mxu0
        %v1441 = vadd.f32 %v1344, %v1440
        %v1442 = vpop.f32.mrb[0].mxu0
        %v1443 = vpop.f32.mrb[0].mxu0
        %v1444 = vadd.f32 %v1347, %v1443
        %v1445 = vpop.f32.mrb[0].mxu0
        %1446 = vmatprep.mubr.bf16.mxu0 0
        %1447 = vmatmul.mubr.bf16.gmra.mrb[0].mxu0 %v895
        %v1448 = vpop.f32.mrb[0].mxu0
        %v1449 = vadd.f32 %v1352, %v1448
        %v1450 = vpop.f32.mrb[0].mxu0
        %v1451 = vpop.f32.mrb[0].mxu0
        %v1452 = vadd.f32 %v1355, %v1451
        %v1453 = vpop.f32.mrb[0].mxu0
        %1454 = vmatprep.mubr.bf16.mxu0 0
        %1455 = vmatmul.mubr.bf16.gmra.mrb[0].mxu0 %v900
        %v1456 = vpop.f32.mrb[0].mxu0
        %v1457 = vadd.f32 %v1360, %v1456
        %v1458 = vpop.f32.mrb[0].mxu0
        %v1459 = vpop.f32.mrb[0].mxu0
        %v1460 = vadd.f32 %v1363, %v1459
        %v1461 = vpop.f32.mrb[0].mxu0
        %1462 = vmatprep.mubr.bf16.mxu0 0
        %1463 = vmatmul.mubr.bf16.gmra.mrb[0].mxu0 %v905
        %v1464 = vpop.f32.mrb[0].mxu0
        %v1465 = vadd.f32 %v1368, %v1464
        %v1466 = vpop.f32.mrb[0].mxu0
        %v1467 = vpop.f32.mrb[0].mxu0
        %v1468 = vadd.f32 %v1371, %v1467
        %v1469 = vpop.f32.mrb[0].mxu0
        %1470 = vmatprep.mubr.bf16.mxu0 0
        %1471 = vmatmul.mubr.bf16.gmra.mrb[0].mxu0 %v910
        %v1472 = vpop.f32.mrb[0].mxu0
        %v1473 = vadd.f32 %v1376, %v1472
        %v1474 = vpop.f32.mrb[0].mxu0
        %v1475 = vpop.f32.mrb[0].mxu0
        %v1476 = vadd.f32 %v1379, %v1475
        %v1477 = vpop.f32.mrb[0].mxu0
        %1478 = vmatprep.mubr.bf16.mxu0 0
        %1479 = vmatmul.mubr.bf16.gmra.mrb[0].mxu0 %v915
        %v1480 = vpop.f32.mrb[0].mxu0
        %v1481 = vadd.f32 %v1384, %v1480
        %v1482 = vpop.f32.mrb[0].mxu0
        %v1483 = vpop.f32.mrb[0].mxu0
        %v1484 = vadd.f32 %v1387, %v1483
        %v1485 = vpop.f32.mrb[0].mxu0
        %1486 = vdwg.mxu0
        %v1487 = vpack.c.bf16 %v561, %v558
        %v1488 = vpack.c.bf16 %v569, %v566
        %v1489 = vpack.c.bf16 %v577, %v574
        %v1490 = vpack.c.bf16 %v585, %v582
        %v1491 = vpack.c.bf16 %v593, %v590
        %v1492 = vpack.c.bf16 %v601, %v598
        %v1493 = vpack.c.bf16 %v609, %v606
        %v1494 = vpack.c.bf16 %v617, %v614
        %v1495 = vld [vmem:[%s4] sm:$0xf]
        %v1496 = vld [vmem:[%s4 + $0x4] sm:$0xf]
        %v1497 = vld [vmem:[%s4 + $0x8] sm:$0xf]
        %v1498 = vld [vmem:[%s4 + $0xc] sm:$0xf]
        %v1499 = vld [vmem:[%s4 + $0x10] sm:$0xf]
        %v1500 = vld [vmem:[%s4 + $0x14] sm:$0xf]
        %v1501 = vld [vmem:[%s4 + $0x18] sm:$0xf]
        %v1502 = vld [vmem:[%s4 + $0x1c] sm:$0xf]
        %v1503 = vpack.c.bf16 %v1428, %v1425
        %v1504 = vpack.c.bf16 %v1436, %v1433
        %v1505 = vpack.c.bf16 %v1444, %v1441
        %v1506 = vpack.c.bf16 %v1452, %v1449
        %v1507 = vpack.c.bf16 %v1460, %v1457
        %v1508 = vpack.c.bf16 %v1468, %v1465
        %v1509 = vpack.c.bf16 %v1476, %v1473
        %v1510 = vpack.c.bf16 %v1484, %v1481
        %v1511 = vld [vmem:[%s5] sm:$0xf]
        %v1512 = vld [vmem:[%s5 + $0x4] sm:$0x3]
        %v1515 = vunpack.c.l.b16 %v1511
        %v1516 = vunpack.c.l.b16 %v1512
        %v1517 = vpack.c.b16 %v1516, %v1515
        %vm1518 = vcmask 89088
        %v1520 = vsel %vm1518, %v1503, 0
        %v1523 = vsel %vm1518, %v1504, 0
        %v1526 = vsel %vm1518, %v1505, 0
        %v1529 = vsel %vm1518, %v1506, 0
        %v1532 = vsel %vm1518, %v1507, 0
        %v1535 = vsel %vm1518, %v1508, 0
        %v1538 = vsel %vm1518, %v1509, 0
        %v1541 = vsel %vm1518, %v1510, 0
        %vm1543 = vcmask 1044480
        %vm1544 = vcmask 1045504
        %v1545 = vsel %vm1543, 4294967295, 65535
        %v1546 = vsel %vm1544, %v1545, 0
        %v1548 = vand.u32 %v1517, %v1546
        %1550 = vmatprep.subr.bf16.mxu0 0
        %1551 = vmatpush1.bf16.msra.mxu0 %v1548
        %1552 = vmatprep.subr.bf16.mxu0 0
        %1553 = vmatpush1.bf16.msra.mxu0 0
        %1554 = vmatprep.subr.bf16.mxu0 0
        %1555 = vmatpush1.bf16.msra.mxu0 0
        %1556 = vmatprep.subr.bf16.mxu0 0
        %1557 = vmatpush1.bf16.msra.mxu0 0
        %1558 = vmatprep.subr.bf16.mxu0 0
        %1559 = vmatpush1.bf16.msra.mxu0 0
        %1560 = vmatprep.subr.bf16.mxu0 0
        %1561 = vmatpush1.bf16.msra.mxu0 0
        %1562 = vmatprep.subr.bf16.mxu0 0
        %1563 = vmatpush1.bf16.msra.mxu0 0
        %1564 = vmatprep.subr.bf16.mxu0 0
        %1565 = vmatpush1.bf16.msra.mxu0 0
        %1566 = vmatprep.subr.bf16.mxu0 0
        %1567 = vmatpush1.bf16.msra.mxu0 0
        %1568 = vmatprep.subr.bf16.mxu0 0
        %1569 = vmatpush1.bf16.msra.mxu0 0
        %1570 = vmatprep.subr.bf16.mxu0 0
        %1571 = vmatpush1.bf16.msra.mxu0 0
        %1572 = vmatprep.subr.bf16.mxu0 0
        %1573 = vmatpush1.bf16.msra.mxu0 0
        %1574 = vmatprep.subr.bf16.mxu0 0
        %1575 = vmatpush1.bf16.msra.mxu0 0
        %1576 = vmatprep.subr.bf16.mxu0 0
        %1577 = vmatpush1.bf16.msra.mxu0 0
        %1578 = vmatprep.subr.bf16.mxu0 0
        %1579 = vmatpush1.bf16.msra.mxu0 0
        %1580 = vmatprep.subr.bf16.mxu0 0
        %1581 = vmatpush1.bf16.msra.mxu0 0
        %1582 = vmatprep.mubr.bf16.mxu0 0
        %1583 = vmatmul.mubr.bf16.gmra.mrb[0].mxu0 %v1520
        %v1584 = vpop.f32.mrb[0].mxu0
        %v1585 = vadd.f32 0.0, %v1584
        %v1586 = vpop.f32.mrb[0].mxu0
        %v1587 = vpop.f32.mrb[0].mxu0
        %v1588 = vadd.f32 0.0, %v1587
        %v1589 = vpop.f32.mrb[0].mxu0
        %1590 = vmatprep.mubr.bf16.mxu0 0
        %1591 = vmatmul.mubr.bf16.gmra.mrb[0].mxu0 %v1523
        %v1592 = vpop.f32.mrb[0].mxu0
        %v1593 = vadd.f32 0.0, %v1592
        %v1594 = vpop.f32.mrb[0].mxu0
        %v1595 = vpop.f32.mrb[0].mxu0
        %v1596 = vadd.f32 0.0, %v1595
        %v1597 = vpop.f32.mrb[0].mxu0
        %1598 = vmatprep.mubr.bf16.mxu0 0
        %1599 = vmatmul.mubr.bf16.gmra.mrb[0].mxu0 %v1526
        %v1600 = vpop.f32.mrb[0].mxu0
        %v1601 = vadd.f32 0.0, %v1600
        %v1602 = vpop.f32.mrb[0].mxu0
        %v1603 = vpop.f32.mrb[0].mxu0
        %v1604 = vadd.f32 0.0, %v1603
        %v1605 = vpop.f32.mrb[0].mxu0
        %1606 = vmatprep.mubr.bf16.mxu0 0
        %1607 = vmatmul.mubr.bf16.gmra.mrb[0].mxu0 %v1529
        %v1608 = vpop.f32.mrb[0].mxu0
        %v1609 = vadd.f32 0.0, %v1608
        %v1610 = vpop.f32.mrb[0].mxu0
        %v1611 = vpop.f32.mrb[0].mxu0
        %v1612 = vadd.f32 0.0, %v1611
        %v1613 = vpop.f32.mrb[0].mxu0
        %1614 = vmatprep.mubr.bf16.mxu0 0
        %1615 = vmatmul.mubr.bf16.gmra.mrb[0].mxu0 %v1532
        %v1616 = vpop.f32.mrb[0].mxu0
        %v1617 = vadd.f32 0.0, %v1616
        %v1618 = vpop.f32.mrb[0].mxu0
        %v1619 = vpop.f32.mrb[0].mxu0
        %v1620 = vadd.f32 0.0, %v1619
        %v1621 = vpop.f32.mrb[0].mxu0
        %1622 = vmatprep.mubr.bf16.mxu0 0
        %1623 = vmatmul.mubr.bf16.gmra.mrb[0].mxu0 %v1535
        %v1624 = vpop.f32.mrb[0].mxu0
        %v1625 = vadd.f32 0.0, %v1624
        %v1626 = vpop.f32.mrb[0].mxu0
        %v1627 = vpop.f32.mrb[0].mxu0
        %v1628 = vadd.f32 0.0, %v1627
        %v1629 = vpop.f32.mrb[0].mxu0
        %1630 = vmatprep.mubr.bf16.mxu0 0
        %1631 = vmatmul.mubr.bf16.gmra.mrb[0].mxu0 %v1538
        %v1632 = vpop.f32.mrb[0].mxu0
        %v1633 = vadd.f32 0.0, %v1632
        %v1634 = vpop.f32.mrb[0].mxu0
        %v1635 = vpop.f32.mrb[0].mxu0
        %v1636 = vadd.f32 0.0, %v1635
        %v1637 = vpop.f32.mrb[0].mxu0
        %1638 = vmatprep.mubr.bf16.mxu0 0
        %1639 = vmatmul.mubr.bf16.gmra.mrb[0].mxu0 %v1541
        %v1640 = vpop.f32.mrb[0].mxu0
        %v1641 = vadd.f32 0.0, %v1640
        %v1642 = vpop.f32.mrb[0].mxu0
        %v1643 = vpop.f32.mrb[0].mxu0
        %v1644 = vadd.f32 0.0, %v1643
        %v1645 = vpop.f32.mrb[0].mxu0
        %1646 = vdwg.mxu0
        %v1655 = vunpack.c.l.b16 %v1495
        %v1656 = vunpack.c.l.b16 %v1496
        %v1657 = vunpack.c.l.b16 %v1497
        %v1658 = vunpack.c.l.b16 %v1498
        %v1659 = vunpack.c.l.b16 %v1499
        %v1660 = vunpack.c.l.b16 %v1500
        %v1661 = vunpack.c.l.b16 %v1501
        %v1662 = vunpack.c.l.b16 %v1502
        %v1663 = vpack.c.b16 %v1656, %v1655
        %v1664 = vpack.c.b16 %v1658, %v1657
        %v1665 = vpack.c.b16 %v1660, %v1659
        %v1666 = vpack.c.b16 %v1662, %v1661
        %vm1671 = vcmask 523264
        %v1673 = vsel %vm1671, %v1487, 0
        %v1676 = vsel %vm1671, %v1488, 0
        %v1679 = vsel %vm1671, %v1489, 0
        %v1682 = vsel %vm1671, %v1490, 0
        %v1685 = vsel %vm1671, %v1491, 0
        %v1688 = vsel %vm1671, %v1492, 0
        %v1691 = vsel %vm1671, %v1493, 0
        %v1694 = vsel %vm1671, %v1494, 0
        %1696 = vmatprep.subr.bf16.mxu0 0
        %1697 = vmatpush1.bf16.msra.mxu0 %v1663
        %1698 = vmatprep.subr.bf16.mxu0 0
        %1699 = vmatpush1.bf16.msra.mxu0 %v1664
        %1700 = vmatprep.subr.bf16.mxu0 0
        %1701 = vmatpush1.bf16.msra.mxu0 %v1665
        %1702 = vmatprep.subr.bf16.mxu0 0
        %1703 = vmatpush1.bf16.msra.mxu0 %v1666
        %1704 = vmatprep.subr.bf16.mxu0 0
        %1705 = vmatpush1.bf16.msra.mxu0 0
        %1706 = vmatprep.subr.bf16.mxu0 0
        %1707 = vmatpush1.bf16.msra.mxu0 0
        %1708 = vmatprep.subr.bf16.mxu0 0
        %1709 = vmatpush1.bf16.msra.mxu0 0
        %1710 = vmatprep.subr.bf16.mxu0 0
        %1711 = vmatpush1.bf16.msra.mxu0 0
        %1712 = vmatprep.subr.bf16.mxu0 0
        %1713 = vmatpush1.bf16.msra.mxu0 0
        %1714 = vmatprep.subr.bf16.mxu0 0
        %1715 = vmatpush1.bf16.msra.mxu0 0
        %1716 = vmatprep.subr.bf16.mxu0 0
        %1717 = vmatpush1.bf16.msra.mxu0 0
        %1718 = vmatprep.subr.bf16.mxu0 0
        %1719 = vmatpush1.bf16.msra.mxu0 0
        %1720 = vmatprep.subr.bf16.mxu0 0
        %1721 = vmatpush1.bf16.msra.mxu0 0
        %1722 = vmatprep.subr.bf16.mxu0 0
        %1723 = vmatpush1.bf16.msra.mxu0 0
        %1724 = vmatprep.subr.bf16.mxu0 0
        %1725 = vmatpush1.bf16.msra.mxu0 0
        %1726 = vmatprep.subr.bf16.mxu0 0
        %1727 = vmatpush1.bf16.msra.mxu0 0
        %1728 = vmatprep.mubr.bf16.mxu0 0
        %1729 = vmatmul.mubr.bf16.gmra.mrb[0].mxu0 %v1673
        %v1730 = vpop.f32.mrb[0].mxu0
        %v1731 = vadd.f32 %v1585, %v1730
        %v1732 = vpop.f32.mrb[0].mxu0
        %v1733 = vpop.f32.mrb[0].mxu0
        %v1734 = vadd.f32 %v1588, %v1733
        %v1735 = vpop.f32.mrb[0].mxu0
        %1736 = vmatprep.mubr.bf16.mxu0 0
        %1737 = vmatmul.mubr.bf16.gmra.mrb[0].mxu0 %v1676
        %v1738 = vpop.f32.mrb[0].mxu0
        %v1739 = vadd.f32 %v1593, %v1738
        %v1740 = vpop.f32.mrb[0].mxu0
        %v1741 = vpop.f32.mrb[0].mxu0
        %v1742 = vadd.f32 %v1596, %v1741
        %v1743 = vpop.f32.mrb[0].mxu0
        %1744 = vmatprep.mubr.bf16.mxu0 0
        %1745 = vmatmul.mubr.bf16.gmra.mrb[0].mxu0 %v1679
        %v1746 = vpop.f32.mrb[0].mxu0
        %v1747 = vadd.f32 %v1601, %v1746
        %v1748 = vpop.f32.mrb[0].mxu0
        %v1749 = vpop.f32.mrb[0].mxu0
        %v1750 = vadd.f32 %v1604, %v1749
        %v1751 = vpop.f32.mrb[0].mxu0
        %1752 = vmatprep.mubr.bf16.mxu0 0
        %1753 = vmatmul.mubr.bf16.gmra.mrb[0].mxu0 %v1682
        %v1754 = vpop.f32.mrb[0].mxu0
        %v1755 = vadd.f32 %v1609, %v1754
        %v1756 = vpop.f32.mrb[0].mxu0
        %v1757 = vpop.f32.mrb[0].mxu0
        %v1758 = vadd.f32 %v1612, %v1757
        %v1759 = vpop.f32.mrb[0].mxu0
        %1760 = vmatprep.mubr.bf16.mxu0 0
        %1761 = vmatmul.mubr.bf16.gmra.mrb[0].mxu0 %v1685
        %v1762 = vpop.f32.mrb[0].mxu0
        %v1763 = vadd.f32 %v1617, %v1762
        %v1764 = vpop.f32.mrb[0].mxu0
        %v1765 = vpop.f32.mrb[0].mxu0
        %v1766 = vadd.f32 %v1620, %v1765
        %v1767 = vpop.f32.mrb[0].mxu0
        %1768 = vmatprep.mubr.bf16.mxu0 0
        %1769 = vmatmul.mubr.bf16.gmra.mrb[0].mxu0 %v1688
        %v1770 = vpop.f32.mrb[0].mxu0
        %v1771 = vadd.f32 %v1625, %v1770
        %v1772 = vpop.f32.mrb[0].mxu0
        %v1773 = vpop.f32.mrb[0].mxu0
        %v1774 = vadd.f32 %v1628, %v1773
        %v1775 = vpop.f32.mrb[0].mxu0
        %1776 = vmatprep.mubr.bf16.mxu0 0
        %1777 = vmatmul.mubr.bf16.gmra.mrb[0].mxu0 %v1691
        %v1778 = vpop.f32.mrb[0].mxu0
        %v1779 = vadd.f32 %v1633, %v1778
        %v1780 = vpop.f32.mrb[0].mxu0
        %v1781 = vpop.f32.mrb[0].mxu0
        %v1782 = vadd.f32 %v1636, %v1781
        %v1783 = vpop.f32.mrb[0].mxu0
        %1784 = vmatprep.mubr.bf16.mxu0 0
        %1785 = vmatmul.mubr.bf16.gmra.mrb[0].mxu0 %v1694
        %v1786 = vpop.f32.mrb[0].mxu0
        %v1787 = vadd.f32 %v1641, %v1786
        %v1788 = vpop.f32.mrb[0].mxu0
        %v1789 = vpop.f32.mrb[0].mxu0
        %v1790 = vadd.f32 %v1644, %v1789
        %v1791 = vpop.f32.mrb[0].mxu0
        %1792 = vdwg.mxu0
        %1793 = vst [vmem:[%s288] sm:$0xff] %v1731
        %1794 = vst [vmem:[%s288 + $0x8] sm:$0xff] %v1734
        %1795 = vst [vmem:[%s288 + $0x10] sm:$0xff] %v1739
        %1796 = vst [vmem:[%s288 + $0x18] sm:$0xff] %v1742
        %1797 = vst [vmem:[%s288 + $0x20] sm:$0xff] %v1747
        %1798 = vst [vmem:[%s288 + $0x28] sm:$0xff] %v1750
        %1799 = vst [vmem:[%s288 + $0x30] sm:$0xff] %v1755
        %1800 = vst [vmem:[%s288 + $0x38] sm:$0xff] %v1758
        %1801 = vst [vmem:[%s288 + $0x40] sm:$0xff] %v1763
        %1802 = vst [vmem:[%s288 + $0x48] sm:$0xff] %v1766
        %1803 = vst [vmem:[%s288 + $0x50] sm:$0xff] %v1771
        %1804 = vst [vmem:[%s288 + $0x58] sm:$0xff] %v1774
        %1805 = vst [vmem:[%s288 + $0x60] sm:$0xff] %v1779
        %1806 = vst [vmem:[%s288 + $0x68] sm:$0xff] %v1782
        %1807 = vst [vmem:[%s288 + $0x70] sm:$0xff] %v1787
        %1808 = vst [vmem:[%s288 + $0x78] sm:$0xff] %v1790
        %s1809 = sand.u32 %s167, 1
        %s1810 = scalar_lea.sflag [#allocation4], %s1809
        %s1811 = sand.u32 %s167, 1
        %s1812 = smul.addr %s1811, 128
        %s1813 = scalar_lea.vmem [#allocation5], %s1812
        // Predicated region
        $region49: #{tpu_custom_call.1} parent=43 // pred_check
          %p1814 = pneg %p177
        $region50: #{tpu_custom_call.1} parent=43 // pred_check_branch
          %1816 = sbr.rel (%p1814) target = $region52
        $region51: #{tpu_custom_call.1} parent=43 // pred_region
          %s1817 = smul.u32 16, %s23
          %s1819 = ssub.s32 2048, 2048
          %1820 = vsyncadd %s1810, %s1819
          %s1821 = smul.addr %s1817, 128
          %s1822 = scalar_lea.hbm %s6, %s1821
          %s1823 = sshll.u32 %s1813, 4
          %s1824 = int_to_ptr.vmem [resolvable:$true] %s1823
          %1829 = dma.vmem_to_hbm [thread:$0]  %s1824, 2048, %s1822, %s1810, 128, 128, 8
        $region52: #{tpu_custom_call.1} parent=43 // pred_fallthru
          _
      $region44: #{tpu_custom_call.1} parent=5 // pred_fallthru
        _
      %p1830 = scmp.le.s32.totalorder 2, %s18
      // Predicated region
      $region53: #{tpu_custom_call.1} parent=5 // pred_check
        %p1831 = pneg %p1830
      $region54: #{tpu_custom_call.1} parent=5 // pred_check_branch
        %1833 = sbr.rel (%p1831) target = $region56
      $region55: #{tpu_custom_call.1} parent=5 // pred_region
        %s1834 = ssub.s32 %s18, 2
        // Predicated region
        $region57: #{tpu_custom_call.1} parent=55 // pred_check
          %p1835 = pneg %p183
        $region58: #{tpu_custom_call.1} parent=55 // pred_check_branch
          %1837 = sbr.rel (%p1835) target = $region60
        $region59: #{tpu_custom_call.1} parent=55 // pred_region
          %s1838 = sand.u32 %s168, 1
          %s1839 = scalar_lea.sflag [#allocation4], %s1838
          %s1840 = sand.u32 %s168, 1
          %s1841 = smul.addr %s1840, 128
          %s1842 = scalar_lea.vmem [#allocation5], %s1841
          %1843 = dma.done %s1839, 2048
        $region60: #{tpu_custom_call.1} parent=55 // pred_fallthru
          _
      $region56: #{tpu_custom_call.1} parent=5 // pred_fallthru
        _
    $region6: #{tpu_custom_call.1} parent=1 // loop_footer
      %s22 = sadd.s32 1, %s18
    $region7: #{tpu_custom_call.1} parent=1 // loop_footer_branch
      %17 = sbr.rel target = $region3
    $region8: #{tpu_custom_call.1} parent=1 // loop_exit
      _
    %1844 = vsyncpa [#allocation3], 1
    %s1845 = scalar_lea.sflag [#allocation3], 1
    %1846 = vsyncpa %s1845, 1
    %1847 = vsyncpa [#allocation4], 1
    %s1848 = scalar_lea.sflag [#allocation4], 1
    %1849 = vsyncpa %s1848, 1

</llo_original>
